<compile_context>
chip_gen: v7x
topology: tpu7x:2x2x1
jax: 0.10.0
libtpu: 0.0.40
codegen_flags: <defaults>
</compile_context>

<pallas_src>
import numpy as np
import jax
import jax.numpy as jnp
from jax.experimental import pallas as pl
from jax.experimental.pallas import tpu as pltpu

_WINDOW = 11
_SIGMA = 1.5
_C1 = 0.01 ** 2
_C2 = 0.03 ** 2


def _gaussian_1d_np(window_size=_WINDOW, sigma=_SIGMA):
    x = np.arange(window_size, dtype=np.float64)
    g = np.exp(-((x - window_size // 2) ** 2) / (2.0 * sigma ** 2)).astype(np.float32)
    return g / g.sum()


def _band_matrix_np(n, gauss, window_size=_WINDOW):
    """(n, n) banded M with M[i, j] = g[j - i + pad]; M @ x is the zero-padded
    'same' 1D Gaussian convolution along the leading axis (matches conv2d's
    zero padding)."""
    pad = window_size // 2
    m = np.zeros((n, n), dtype=np.float32)
    for i in range(n):
        for j in range(max(0, i - pad), min(n, i + pad + 1)):
            m[i, j] = gauss[j - i + pad]
    return m


def _divisors(n):
    return [d for d in range(1, n + 1) if n % d == 0]


def _pick_pack_factors(n, h, w, lo=128, hi=256):
    """Jointly choose (lh, lw) with lh*lw | n so the packed slab (lh*h, lw*w)
    is balanced and MXU/lane friendly:
      1. push min(sh, sw) toward 128 (basic lane / contraction density),
      2. keep >= 2 slabs when possible (2-TC grid sharding on v7x),
      3. then push both axes toward the 256 cap (full v6e/v7x MXU occupancy),
      4. favour the lane axis (sw) on ties,
      5. finally prefer fewer dense-band FLOPs (smaller sh + sw)."""
    best, best_key = None, None
    for lw in _divisors(n):
        sw = lw * w
        if lw > 1 and sw > hi:
            continue
        for lh in _divisors(n // lw):
            sh = lh * h
            if lh > 1 and sh > hi:
                continue
            g = n // (lh * lw)
            key = (min(sh, sw, lo),
                   1 if g >= 2 else 0,
                   min(sh, sw, hi),
                   min(sw, hi),
                   -(sh + sw),
                   sw)
            if best_key is None or key > best_key:
                best_key, best = key, (lh, lw)
    return best


def _bce_ssim_kernel(p_ref, r_ref, ch_ref, cwt_ref, bce_ref, ssim_ref):
    f32 = jnp.float32
    p = p_ref[...]           # (sh, sw) packed slab of lh*lw planes
    r = r_ref[...]
    sh, sw = p.shape

    # ---- BCE partial (PyTorch BCELoss clamps log at -100).  Pure VPU/EUP
    # work that overlaps the MXU conv matmuls below. ----
    logp = jnp.maximum(jnp.log(p), -100.0)
    log1mp = jnp.maximum(jnp.log(1.0 - p), -100.0)
    bce_map = -(r * logp + (1.0 - r) * log1mp)

    # ---- SSIM: separable zero-padded 11x11 Gaussian blur of the five maps,
    # as block-diagonal band matmuls on the MXU.  bf16x3 hi/lo contraction
    # (~Precision.HIGH accuracy, single-pass native bf16 dots). ----
    def hi_lo(x):
        hi = x.astype(jnp.bfloat16)
        lo = (x - hi.astype(f32)).astype(jnp.bfloat16)
        return hi, lo

    def dot3(ah, al, bh, bl):
        d = lambda x, y: jnp.dot(x, y, preferred_element_type=f32)
        return d(ah, bh) + d(ah, bl) + d(al, bh)

    # Batch the W-conv: stack the 5 inputs along sublanes -> one tall matmul.
    x5 = jnp.concatenate([p, r, p * p, r * r, p * r], axis=0)   # (5*sh, sw)
    cwh, cwl = hi_lo(cwt_ref[...])
    x5h, x5l = hi_lo(x5)
    t5 = dot3(x5h, x5l, cwh, cwl)                               # (5*sh, sw) f32

    # H-conv per map (static, tile-aligned slices of the stacked result).
    chh, chl = hi_lo(ch_ref[...])
    t5h, t5l = hi_lo(t5)
    blurred = [
        dot3(chh, chl,
             t5h[i * sh:(i + 1) * sh, :],
             t5l[i * sh:(i + 1) * sh, :])
        for i in range(5)
    ]
    mu1, mu2, e_pp, e_rr, e_pr = blurred

    mu1mu2 = mu1 * mu2
    musq = mu1 * mu1 + mu2 * mu2
    num = (2.0 * mu1mu2 + _C1) * (2.0 * (e_pr - mu1mu2) + _C2)
    den = (musq + _C1) * (e_pp + e_rr - musq + _C2)
    ssim_map = num / den

    # ---- (8, 128) partial-sum tiles: tile-wise VPU adds when the slab is
    # (8,128)-aligned (no XLU cross-lane reduce), scalar fallback otherwise.
    # The wrapper finishes the reduction over (G, 8, 128). ----
    def partial_tile(x):
        if sh % 8 == 0 and sw % 128 == 0:
            t = x.reshape(sh // 8, 8, sw).sum(axis=0)          # (8, sw)
            return t.reshape(8, sw // 128, 128).sum(axis=1)    # (8, 128)
        s = jnp.sum(x)
        ri = jax.lax.broadcasted_iota(jnp.int32, (8, 128), 0)
        ci = jax.lax.broadcasted_iota(jnp.int32, (8, 128), 1)
        return jnp.where((ri == 0) & (ci == 0), s, 0.0)

    bce_ref[...] = partial_tile(bce_map)
    ssim_ref[...] = partial_tile(ssim_map)


def bce_ssim_loss(pmask, rmask):
    """Equivalent of BCE_SSIM(size_average=True, issigmoid=False)(pmask, rmask)."""
    b, c, h, w = pmask.shape
    n = b * c

    lh, lw = _pick_pack_factors(n, h, w)
    num_groups = n // (lh * lw)
    sh, sw = lh * h, lw * w

    # Pack the B*C depthwise planes into (G, lh*H, lw*W) slabs: lane-dense last
    # dim, balanced sublane extent; XLA-side layout plumbing only.
    def pack(x):
        x = x.reshape(num_groups, lh, lw, h, w).astype(jnp.float32)
        x = x.transpose(0, 1, 3, 2, 4)                 # (G, lh, H, lw, W)
        return x.reshape(num_groups, sh, sw)

    p = pack(pmask)
    r = pack(rmask)

    # Block-diagonal banded Gaussian matrices (planes never mix; zero padding
    # falls out of the band structure).
    gauss = _gaussian_1d_np()
    ch_bd = jnp.asarray(np.kron(np.eye(lh, dtype=np.float32),
                                _band_matrix_np(h, gauss)))
    cwt_bd = jnp.asarray(np.kron(np.eye(lw, dtype=np.float32),
                                 _band_matrix_np(w, gauss).T))

    cost = pl.CostEstimate(
        # 5 blurs, 2 flops/MAC, 3 bf16 passes, dense band cost prop. to sh+sw.
        flops=int(30 * n * h * w * (sh + sw)),
        transcendentals=int(2 * n * h * w),
        bytes_accessed=int(8 * n * h * w + 4 * (sh * sh + sw * sw)
                           + num_groups * 2 * 8 * 128 * 4),
    )

    bce_parts, ssim_parts = pl.pallas_call(
        _bce_ssim_kernel,
        out_shape=(
            jax.ShapeDtypeStruct((num_groups, 8, 128), jnp.float32),
            jax.ShapeDtypeStruct((num_groups, 8, 128), jnp.float32),
        ),
        grid_spec=pltpu.PrefetchScalarGridSpec(
            num_scalar_prefetch=0,
            grid=(num_groups,),
            in_specs=[
                pl.BlockSpec((None, sh, sw), lambda i: (i, 0, 0)),
                pl.BlockSpec((None, sh, sw), lambda i: (i, 0, 0)),
                pl.BlockSpec((sh, sh), lambda i: (0, 0)),   # constant: fetched once
                pl.BlockSpec((sw, sw), lambda i: (0, 0)),   # constant: fetched once
            ],
            out_specs=(
                pl.BlockSpec((None, 8, 128), lambda i: (i, 0, 0)),
                pl.BlockSpec((None, 8, 128), lambda i: (i, 0, 0)),
            ),
        ),
        compiler_params=pltpu.CompilerParams(
            dimension_semantics=("parallel",),
            vmem_limit_bytes=32 * 1024 * 1024,
        ),
        cost_estimate=cost,
    )(p, r, ch_bd, cwt_bd)

    total = jnp.float32(n * h * w)
    bce_mean = jnp.sum(bce_parts) / total
    ssim_mean = jnp.sum(ssim_parts) / total
    return bce_mean + (1.0 - ssim_mean)


if __name__ == "__main__":
    key = jax.random.PRNGKey(0)
    k1, k2 = jax.random.split(key)
    B, C, H, W = 2, 4, 16, 16
    # issigmoid=False: pmask must already be a probability in (0, 1)
    pmask = jax.nn.sigmoid(jax.random.normal(k1, (B, C, H, W), dtype=jnp.float32))
    rmask = (jax.random.uniform(k2, (B, C, H, W)) > 0.5).astype(jnp.float32)

    loss = bce_ssim_loss(pmask, rmask)
    jax.block_until_ready(loss)
    print("KERNEL_OK")
</pallas_src>

<mosaic_0001>
module attributes {stable_mosaic.version = 11 : i64} {
  func.func @_bce_ssim_kernel(%arg0: i32, %arg1: memref<1x32x32xf32, #tpu.memory_space<vmem>>, %arg2: memref<1x32x32xf32, #tpu.memory_space<vmem>>, %arg3: memref<32x32xf32, #tpu.memory_space<vmem>>, %arg4: memref<32x32xf32, #tpu.memory_space<vmem>>, %arg5: memref<1x8x128xf32, #tpu.memory_space<vmem>>, %arg6: memref<1x8x128xf32, #tpu.memory_space<vmem>>) attributes {dimension_semantics = [#tpu.dimension_semantics<parallel>], iteration_bounds = array<i64: 2>, scalar_prefetch = 0 : i64, scratch_operands = 0 : i64, tpu.core_type = #tpu.core_type<tc>, window_params = [{transform_indices = @transform_0, window_bounds = array<i64: 1, 32, 32>}, {transform_indices = @transform_1, window_bounds = array<i64: 1, 32, 32>}, {pipeline_mode = #tpu.pipeline_mode<synchronous>, transform_indices = @transform_2, window_bounds = array<i64: 32, 32>}, {pipeline_mode = #tpu.pipeline_mode<synchronous>, transform_indices = @transform_3, window_bounds = array<i64: 32, 32>}, {transform_indices = @transform_4, window_bounds = array<i64: 1, 8, 128>}, {transform_indices = @transform_5, window_bounds = array<i64: 1, 8, 128>}]} {
    %c0 = arith.constant 0 : index
    %c0_0 = arith.constant 0 : index
    %c0_1 = arith.constant 0 : index
    %0 = vector.load %arg1[%c0, %c0_0, %c0_1] : memref<1x32x32xf32, #tpu.memory_space<vmem>>, vector<1x32x32xf32>
    %1 = vector.shape_cast %0 : vector<1x32x32xf32> to vector<32x32xf32>
    %c0_2 = arith.constant 0 : index
    %c0_3 = arith.constant 0 : index
    %c0_4 = arith.constant 0 : index
    %2 = vector.load %arg2[%c0_2, %c0_3, %c0_4] : memref<1x32x32xf32, #tpu.memory_space<vmem>>, vector<1x32x32xf32>
    %3 = vector.shape_cast %2 : vector<1x32x32xf32> to vector<32x32xf32>
    %4 = math.log %1 : vector<32x32xf32>
    %cst = arith.constant -1.000000e+02 : f32
    %5 = vector.broadcast %cst : f32 to vector<32x32xf32>
    %6 = arith.maximumf %4, %5 : vector<32x32xf32>
    %cst_5 = arith.constant 1.000000e+00 : f32
    %7 = vector.broadcast %cst_5 : f32 to vector<32x32xf32>
    %8 = arith.subf %7, %1 : vector<32x32xf32>
    %9 = math.log %8 : vector<32x32xf32>
    %cst_6 = arith.constant -1.000000e+02 : f32
    %10 = vector.broadcast %cst_6 : f32 to vector<32x32xf32>
    %11 = arith.maximumf %9, %10 : vector<32x32xf32>
    %12 = arith.mulf %3, %6 : vector<32x32xf32>
    %cst_7 = arith.constant 1.000000e+00 : f32
    %13 = vector.broadcast %cst_7 : f32 to vector<32x32xf32>
    %14 = arith.subf %13, %3 : vector<32x32xf32>
    %15 = arith.mulf %14, %11 : vector<32x32xf32>
    %16 = arith.addf %12, %15 : vector<32x32xf32>
    %cst_8 = arith.constant 0.000000e+00 : f32
    %17 = vector.broadcast %cst_8 : f32 to vector<32x32xf32>
    %18 = arith.subf %17, %16 : vector<32x32xf32>
    %19 = arith.mulf %1, %1 : vector<32x32xf32>
    %20 = arith.mulf %3, %3 : vector<32x32xf32>
    %21 = arith.mulf %1, %3 : vector<32x32xf32>
    %22 = tpu.concatenate %1, %3, %19, %20, %21 in 0 : vector<32x32xf32>, vector<32x32xf32>, vector<32x32xf32>, vector<32x32xf32>, vector<32x32xf32> -> vector<160x32xf32>
    %c0_9 = arith.constant 0 : index
    %c0_10 = arith.constant 0 : index
    %23 = vector.load %arg4[%c0_9, %c0_10] : memref<32x32xf32, #tpu.memory_space<vmem>>, vector<32x32xf32>
    %24 = arith.truncf %23 : vector<32x32xf32> to vector<32x32xbf16>
    %25 = arith.extf %24 : vector<32x32xbf16> to vector<32x32xf32>
    %26 = arith.subf %23, %25 : vector<32x32xf32>
    %27 = arith.truncf %26 : vector<32x32xf32> to vector<32x32xbf16>
    %28 = arith.truncf %22 : vector<160x32xf32> to vector<160x32xbf16>
    %29 = arith.extf %28 : vector<160x32xbf16> to vector<160x32xf32>
    %30 = arith.subf %22, %29 : vector<160x32xf32>
    %31 = arith.truncf %30 : vector<160x32xf32> to vector<160x32xbf16>
    %cst_11 = arith.constant dense<0.000000e+00> : vector<160x32xf32>
    %32 = tpu.matmul %28, %24, %cst_11 {dimension_numbers = #tpu.dot_dimension_numbers<[1], [0], [0], [1], [0, 0, 1, 1], [], []>} : vector<160x32xbf16>, vector<32x32xbf16>, vector<160x32xf32> -> vector<160x32xf32>
    %cst_12 = arith.constant dense<0.000000e+00> : vector<160x32xf32>
    %33 = tpu.matmul %28, %27, %cst_12 {dimension_numbers = #tpu.dot_dimension_numbers<[1], [0], [0], [1], [0, 0, 1, 1], [], []>} : vector<160x32xbf16>, vector<32x32xbf16>, vector<160x32xf32> -> vector<160x32xf32>
    %34 = arith.addf %32, %33 : vector<160x32xf32>
    %cst_13 = arith.constant dense<0.000000e+00> : vector<160x32xf32>
    %35 = tpu.matmul %31, %24, %cst_13 {dimension_numbers = #tpu.dot_dimension_numbers<[1], [0], [0], [1], [0, 0, 1, 1], [], []>} : vector<160x32xbf16>, vector<32x32xbf16>, vector<160x32xf32> -> vector<160x32xf32>
    %36 = arith.addf %34, %35 : vector<160x32xf32>
    %c0_14 = arith.constant 0 : index
    %c0_15 = arith.constant 0 : index
    %37 = vector.load %arg3[%c0_14, %c0_15] : memref<32x32xf32, #tpu.memory_space<vmem>>, vector<32x32xf32>
    %38 = arith.truncf %37 : vector<32x32xf32> to vector<32x32xbf16>
    %39 = arith.extf %38 : vector<32x32xbf16> to vector<32x32xf32>
    %40 = arith.subf %37, %39 : vector<32x32xf32>
    %41 = arith.truncf %40 : vector<32x32xf32> to vector<32x32xbf16>
    %42 = arith.truncf %36 : vector<160x32xf32> to vector<160x32xbf16>
    %43 = arith.extf %42 : vector<160x32xbf16> to vector<160x32xf32>
    %44 = arith.subf %36, %43 : vector<160x32xf32>
    %45 = arith.truncf %44 : vector<160x32xf32> to vector<160x32xbf16>
    %46 = vector.extract_strided_slice %42 {offsets = [0, 0], sizes = [32, 32], strides = [1, 1]} : vector<160x32xbf16> to vector<32x32xbf16>
    %47 = vector.extract_strided_slice %45 {offsets = [0, 0], sizes = [32, 32], strides = [1, 1]} : vector<160x32xbf16> to vector<32x32xbf16>
    %cst_16 = arith.constant dense<0.000000e+00> : vector<32x32xf32>
    %48 = tpu.matmul %38, %46, %cst_16 {dimension_numbers = #tpu.dot_dimension_numbers<[1], [0], [0], [1], [0, 0, 1, 1], [], []>} : vector<32x32xbf16>, vector<32x32xbf16>, vector<32x32xf32> -> vector<32x32xf32>
    %cst_17 = arith.constant dense<0.000000e+00> : vector<32x32xf32>
    %49 = tpu.matmul %38, %47, %cst_17 {dimension_numbers = #tpu.dot_dimension_numbers<[1], [0], [0], [1], [0, 0, 1, 1], [], []>} : vector<32x32xbf16>, vector<32x32xbf16>, vector<32x32xf32> -> vector<32x32xf32>
    %50 = arith.addf %48, %49 : vector<32x32xf32>
    %cst_18 = arith.constant dense<0.000000e+00> : vector<32x32xf32>
    %51 = tpu.matmul %41, %46, %cst_18 {dimension_numbers = #tpu.dot_dimension_numbers<[1], [0], [0], [1], [0, 0, 1, 1], [], []>} : vector<32x32xbf16>, vector<32x32xbf16>, vector<32x32xf32> -> vector<32x32xf32>
    %52 = arith.addf %50, %51 : vector<32x32xf32>
    %53 = vector.extract_strided_slice %42 {offsets = [32, 0], sizes = [32, 32], strides = [1, 1]} : vector<160x32xbf16> to vector<32x32xbf16>
    %54 = vector.extract_strided_slice %45 {offsets = [32, 0], sizes = [32, 32], strides = [1, 1]} : vector<160x32xbf16> to vector<32x32xbf16>
    %cst_19 = arith.constant dense<0.000000e+00> : vector<32x32xf32>
    %55 = tpu.matmul %38, %53, %cst_19 {dimension_numbers = #tpu.dot_dimension_numbers<[1], [0], [0], [1], [0, 0, 1, 1], [], []>} : vector<32x32xbf16>, vector<32x32xbf16>, vector<32x32xf32> -> vector<32x32xf32>
    %cst_20 = arith.constant dense<0.000000e+00> : vector<32x32xf32>
    %56 = tpu.matmul %38, %54, %cst_20 {dimension_numbers = #tpu.dot_dimension_numbers<[1], [0], [0], [1], [0, 0, 1, 1], [], []>} : vector<32x32xbf16>, vector<32x32xbf16>, vector<32x32xf32> -> vector<32x32xf32>
    %57 = arith.addf %55, %56 : vector<32x32xf32>
    %cst_21 = arith.constant dense<0.000000e+00> : vector<32x32xf32>
    %58 = tpu.matmul %41, %53, %cst_21 {dimension_numbers = #tpu.dot_dimension_numbers<[1], [0], [0], [1], [0, 0, 1, 1], [], []>} : vector<32x32xbf16>, vector<32x32xbf16>, vector<32x32xf32> -> vector<32x32xf32>
    %59 = arith.addf %57, %58 : vector<32x32xf32>
    %60 = vector.extract_strided_slice %42 {offsets = [64, 0], sizes = [32, 32], strides = [1, 1]} : vector<160x32xbf16> to vector<32x32xbf16>
    %61 = vector.extract_strided_slice %45 {offsets = [64, 0], sizes = [32, 32], strides = [1, 1]} : vector<160x32xbf16> to vector<32x32xbf16>
    %cst_22 = arith.constant dense<0.000000e+00> : vector<32x32xf32>
    %62 = tpu.matmul %38, %60, %cst_22 {dimension_numbers = #tpu.dot_dimension_numbers<[1], [0], [0], [1], [0, 0, 1, 1], [], []>} : vector<32x32xbf16>, vector<32x32xbf16>, vector<32x32xf32> -> vector<32x32xf32>
    %cst_23 = arith.constant dense<0.000000e+00> : vector<32x32xf32>
    %63 = tpu.matmul %38, %61, %cst_23 {dimension_numbers = #tpu.dot_dimension_numbers<[1], [0], [0], [1], [0, 0, 1, 1], [], []>} : vector<32x32xbf16>, vector<32x32xbf16>, vector<32x32xf32> -> vector<32x32xf32>
    %64 = arith.addf %62, %63 : vector<32x32xf32>
    %cst_24 = arith.constant dense<0.000000e+00> : vector<32x32xf32>
    %65 = tpu.matmul %41, %60, %cst_24 {dimension_numbers = #tpu.dot_dimension_numbers<[1], [0], [0], [1], [0, 0, 1, 1], [], []>} : vector<32x32xbf16>, vector<32x32xbf16>, vector<32x32xf32> -> vector<32x32xf32>
    %66 = arith.addf %64, %65 : vector<32x32xf32>
    %67 = vector.extract_strided_slice %42 {offsets = [96, 0], sizes = [32, 32], strides = [1, 1]} : vector<160x32xbf16> to vector<32x32xbf16>
    %68 = vector.extract_strided_slice %45 {offsets = [96, 0], sizes = [32, 32], strides = [1, 1]} : vector<160x32xbf16> to vector<32x32xbf16>
    %cst_25 = arith.constant dense<0.000000e+00> : vector<32x32xf32>
    %69 = tpu.matmul %38, %67, %cst_25 {dimension_numbers = #tpu.dot_dimension_numbers<[1], [0], [0], [1], [0, 0, 1, 1], [], []>} : vector<32x32xbf16>, vector<32x32xbf16>, vector<32x32xf32> -> vector<32x32xf32>
    %cst_26 = arith.constant dense<0.000000e+00> : vector<32x32xf32>
    %70 = tpu.matmul %38, %68, %cst_26 {dimension_numbers = #tpu.dot_dimension_numbers<[1], [0], [0], [1], [0, 0, 1, 1], [], []>} : vector<32x32xbf16>, vector<32x32xbf16>, vector<32x32xf32> -> vector<32x32xf32>
    %71 = arith.addf %69, %70 : vector<32x32xf32>
    %cst_27 = arith.constant dense<0.000000e+00> : vector<32x32xf32>
    %72 = tpu.matmul %41, %67, %cst_27 {dimension_numbers = #tpu.dot_dimension_numbers<[1], [0], [0], [1], [0, 0, 1, 1], [], []>} : vector<32x32xbf16>, vector<32x32xbf16>, vector<32x32xf32> -> vector<32x32xf32>
    %73 = arith.addf %71, %72 : vector<32x32xf32>
    %74 = vector.extract_strided_slice %42 {offsets = [128, 0], sizes = [32, 32], strides = [1, 1]} : vector<160x32xbf16> to vector<32x32xbf16>
    %75 = vector.extract_strided_slice %45 {offsets = [128, 0], sizes = [32, 32], strides = [1, 1]} : vector<160x32xbf16> to vector<32x32xbf16>
    %cst_28 = arith.constant dense<0.000000e+00> : vector<32x32xf32>
    %76 = tpu.matmul %38, %74, %cst_28 {dimension_numbers = #tpu.dot_dimension_numbers<[1], [0], [0], [1], [0, 0, 1, 1], [], []>} : vector<32x32xbf16>, vector<32x32xbf16>, vector<32x32xf32> -> vector<32x32xf32>
    %cst_29 = arith.constant dense<0.000000e+00> : vector<32x32xf32>
    %77 = tpu.matmul %38, %75, %cst_29 {dimension_numbers = #tpu.dot_dimension_numbers<[1], [0], [0], [1], [0, 0, 1, 1], [], []>} : vector<32x32xbf16>, vector<32x32xbf16>, vector<32x32xf32> -> vector<32x32xf32>
    %78 = arith.addf %76, %77 : vector<32x32xf32>
    %cst_30 = arith.constant dense<0.000000e+00> : vector<32x32xf32>
    %79 = tpu.matmul %41, %74, %cst_30 {dimension_numbers = #tpu.dot_dimension_numbers<[1], [0], [0], [1], [0, 0, 1, 1], [], []>} : vector<32x32xbf16>, vector<32x32xbf16>, vector<32x32xf32> -> vector<32x32xf32>
    %80 = arith.addf %78, %79 : vector<32x32xf32>
    %81 = arith.mulf %52, %59 : vector<32x32xf32>
    %82 = arith.mulf %52, %52 : vector<32x32xf32>
    %83 = arith.mulf %59, %59 : vector<32x32xf32>
    %84 = arith.addf %82, %83 : vector<32x32xf32>
    %cst_31 = arith.constant 2.000000e+00 : f32
    %85 = vector.broadcast %cst_31 : f32 to vector<32x32xf32>
    %86 = arith.mulf %85, %81 : vector<32x32xf32>
    %cst_32 = arith.constant 9.99999974E-5 : f32
    %87 = vector.broadcast %cst_32 : f32 to vector<32x32xf32>
    %88 = arith.addf %86, %87 : vector<32x32xf32>
    %89 = arith.subf %80, %81 : vector<32x32xf32>
    %cst_33 = arith.constant 2.000000e+00 : f32
    %90 = vector.broadcast %cst_33 : f32 to vector<32x32xf32>
    %91 = arith.mulf %90, %89 : vector<32x32xf32>
    %cst_34 = arith.constant 8.99999984E-4 : f32
    %92 = vector.broadcast %cst_34 : f32 to vector<32x32xf32>
    %93 = arith.addf %91, %92 : vector<32x32xf32>
    %94 = arith.mulf %88, %93 : vector<32x32xf32>
    %cst_35 = arith.constant 9.99999974E-5 : f32
    %95 = vector.broadcast %cst_35 : f32 to vector<32x32xf32>
    %96 = arith.addf %84, %95 : vector<32x32xf32>
    %97 = arith.addf %66, %73 : vector<32x32xf32>
    %98 = arith.subf %97, %84 : vector<32x32xf32>
    %cst_36 = arith.constant 8.99999984E-4 : f32
    %99 = vector.broadcast %cst_36 : f32 to vector<32x32xf32>
    %100 = arith.addf %98, %99 : vector<32x32xf32>
    %101 = arith.mulf %96, %100 : vector<32x32xf32>
    %102 = arith.divf %94, %101 : vector<32x32xf32>
    %103 = vector.shape_cast %18 : vector<32x32xf32> to vector<1x32x32xf32>
    %cst_37 = arith.constant dense<0.000000e+00> : vector<1xf32>
    %104 = vector.multi_reduction <add>, %103, %cst_37 [1, 2] : vector<1x32x32xf32> to vector<1xf32>
    %105 = vector.shape_cast %104 : vector<1xf32> to vector<1x1x1xf32>
    %106 = vector.extract %105[0, 0, 0] : f32 from vector<1x1x1xf32>
    %107 = tpu.iota {dimensions = array<i32: 0>} : vector<8x128xi32>
    %108 = tpu.iota {dimensions = array<i32: 1>} : vector<8x128xi32>
    %c0_i32 = arith.constant 0 : i32
    %109 = vector.broadcast %c0_i32 : i32 to vector<8x128xi32>
    %110 = arith.cmpi eq, %107, %109 : vector<8x128xi32>
    %c0_i32_38 = arith.constant 0 : i32
    %111 = vector.broadcast %c0_i32_38 : i32 to vector<8x128xi32>
    %112 = arith.cmpi eq, %108, %111 : vector<8x128xi32>
    %113 = arith.andi %110, %112 : vector<8x128xi1>
    %cst_39 = arith.constant 0.000000e+00 : f32
    %114 = vector.broadcast %106 : f32 to vector<8x128xf32>
    %115 = vector.broadcast %cst_39 : f32 to vector<8x128xf32>
    %116 = arith.select %113, %114, %115 : vector<8x128xi1>, vector<8x128xf32>
    %c0_40 = arith.constant 0 : index
    %c0_41 = arith.constant 0 : index
    %c0_42 = arith.constant 0 : index
    %117 = vector.load %arg5[%c0_40, %c0_41, %c0_42] : memref<1x8x128xf32, #tpu.memory_space<vmem>>, vector<1x8x128xf32>
    %118 = vector.shape_cast %117 : vector<1x8x128xf32> to vector<8x128xf32>
    %119 = vector.shape_cast %116 : vector<8x128xf32> to vector<1x8x128xf32>
    tpu.vector_store %arg5[%c0_40, %c0_41, %c0_42], %119 {strides = array<i32>} : memref<1x8x128xf32, #tpu.memory_space<vmem>>, vector<1x8x128xf32>,
    %120 = vector.shape_cast %102 : vector<32x32xf32> to vector<1x32x32xf32>
    %cst_43 = arith.constant dense<0.000000e+00> : vector<1xf32>
    %121 = vector.multi_reduction <add>, %120, %cst_43 [1, 2] : vector<1x32x32xf32> to vector<1xf32>
    %122 = vector.shape_cast %121 : vector<1xf32> to vector<1x1x1xf32>
    %123 = vector.extract %122[0, 0, 0] : f32 from vector<1x1x1xf32>
    %124 = tpu.iota {dimensions = array<i32: 0>} : vector<8x128xi32>
    %125 = tpu.iota {dimensions = array<i32: 1>} : vector<8x128xi32>
    %c0_i32_44 = arith.constant 0 : i32
    %126 = vector.broadcast %c0_i32_44 : i32 to vector<8x128xi32>
    %127 = arith.cmpi eq, %124, %126 : vector<8x128xi32>
    %c0_i32_45 = arith.constant 0 : i32
    %128 = vector.broadcast %c0_i32_45 : i32 to vector<8x128xi32>
    %129 = arith.cmpi eq, %125, %128 : vector<8x128xi32>
    %130 = arith.andi %127, %129 : vector<8x128xi1>
    %cst_46 = arith.constant 0.000000e+00 : f32
    %131 = vector.broadcast %123 : f32 to vector<8x128xf32>
    %132 = vector.broadcast %cst_46 : f32 to vector<8x128xf32>
    %133 = arith.select %130, %131, %132 : vector<8x128xi1>, vector<8x128xf32>
    %c0_47 = arith.constant 0 : index
    %c0_48 = arith.constant 0 : index
    %c0_49 = arith.constant 0 : index
    %134 = vector.load %arg6[%c0_47, %c0_48, %c0_49] : memref<1x8x128xf32, #tpu.memory_space<vmem>>, vector<1x8x128xf32>
    %135 = vector.shape_cast %134 : vector<1x8x128xf32> to vector<8x128xf32>
    %136 = vector.shape_cast %133 : vector<8x128xf32> to vector<1x8x128xf32>
    tpu.vector_store %arg6[%c0_47, %c0_48, %c0_49], %136 {strides = array<i32>} : memref<1x8x128xf32, #tpu.memory_space<vmem>>, vector<1x8x128xf32>,
    return
  }
  func.func @transform_0(%arg0: i32) -> (i32, i32, i32) {
    %c0_i32 = arith.constant 0 : i32
    %c0_i32_0 = arith.constant 0 : i32
    %c0_i32_1 = arith.constant 0 : i32
    return %arg0, %c0_i32, %c0_i32_0 : i32, i32, i32
  }
  func.func @transform_1(%arg0: i32) -> (i32, i32, i32) {
    %c0_i32 = arith.constant 0 : i32
    %c0_i32_0 = arith.constant 0 : i32
    %c0_i32_1 = arith.constant 0 : i32
    return %arg0, %c0_i32, %c0_i32_0 : i32, i32, i32
  }
  func.func @transform_2(%arg0: i32) -> (i32, i32) {
    %c0_i32 = arith.constant 0 : i32
    %c0_i32_0 = arith.constant 0 : i32
    %c0_i32_1 = arith.constant 0 : i32
    return %c0_i32, %c0_i32_0 : i32, i32
  }
  func.func @transform_3(%arg0: i32) -> (i32, i32) {
    %c0_i32 = arith.constant 0 : i32
    %c0_i32_0 = arith.constant 0 : i32
    %c0_i32_1 = arith.constant 0 : i32
    return %c0_i32, %c0_i32_0 : i32, i32
  }
  func.func @transform_4(%arg0: i32) -> (i32, i32, i32) {
    %c0_i32 = arith.constant 0 : i32
    %c0_i32_0 = arith.constant 0 : i32
    %c0_i32_1 = arith.constant 0 : i32
    return %arg0, %c0_i32, %c0_i32_0 : i32, i32, i32
  }
  func.func @transform_5(%arg0: i32) -> (i32, i32, i32) {
    %c0_i32 = arith.constant 0 : i32
    %c0_i32_0 = arith.constant 0 : i32
    %c0_i32_1 = arith.constant 0 : i32
    return %arg0, %c0_i32, %c0_i32_0 : i32, i32, i32
  }
}

</mosaic_0001>

<llo_original>
// kernel: tpu_custom_call.1
$region0: #{tpu_custom_call.1}
  #allocation0 [shape = 'u32[]', space=smem, size = 0x4, offset = 0x4, fixed_abs, tag = 'smem constant byte address 0x4 - core index']
  #allocation1 [shape = 'u32[144,128]{1,0:T(1,128)}', space=vmem, size = 0x12000, scoped, tag = 'internal scratch']
  %s0 = inlined_call_operand.hbm [shape: f32[2,32,32], index: 0, kind: input, shape index: {}]
  %s1 = inlined_call_operand.hbm [shape: f32[2,32,32], index: 1, kind: input, shape index: {}]
  %s2 = inlined_call_operand.hbm [shape: f32[32,32], index: 2, kind: input, shape index: {}]
  %s3 = inlined_call_operand.hbm [shape: f32[32,32], index: 3, kind: input, shape index: {}]
  %s4 = inlined_call_operand.hbm [shape: f32[2,8,128], index: 4, kind: output, shape index: {0}]
  %s5 = inlined_call_operand.hbm [shape: f32[2,8,128], index: 5, kind: output, shape index: {1}]
  %6 = xla_tuple %s4, %s5
  %s7 = sld [smem:[#allocation0]]
  $region73: #{tpu_custom_call.1} parent=0
    _
  %s9 = ssub.s32 1, %s7
  %s10 = scalar_select 0, %s9, %s7
  $region1: #{tpu_custom_call.1} parent=0
    #allocation2 [shape = 'u8[32768]{0}', space=vmem, size = 0x8000, scoped, tag = 'input window, operand 0']
    #allocation3 [shape = 's32[2]{0}', space=sflag, size = 0x8, scoped, tag = 'scoped memory for tpu_custom_call.1']
    #allocation4 [shape = 's32[2]{0}', space=sflag, size = 0x8, scoped, tag = 'scoped memory for tpu_custom_call.1']
    #allocation5 [shape = 'u8[32768]{0}', space=vmem, size = 0x8000, scoped, tag = 'input window, operand 1']
    #allocation6 [shape = 's32[2]{0}', space=sflag, size = 0x8, scoped, tag = 'scoped memory for tpu_custom_call.1']
    #allocation7 [shape = 'u8[16384]{0}', space=vmem, size = 0x4000, scoped, tag = 'input window, operand 2, single buffered']
    #allocation8 [shape = 'u8[16384]{0}', space=vmem, size = 0x4000, scoped, tag = 'input window, operand 3, single buffered']
    #allocation9 [shape = 's32[1]{0}', space=sflag, size = 0x4, scoped, tag = 'scoped memory for tpu_custom_call.1']
    #allocation10 [shape = 'u8[8192]{0}', space=vmem, size = 0x2000, scoped, tag = 'output window, operand 0']
    #allocation11 [shape = 'u8[8192]{0}', space=vmem, size = 0x2000, scoped, tag = 'output window, operand 1']
    #allocation12 [shape = 's32[2]{0}', space=sflag, size = 0x8, scoped, tag = 'scoped memory for tpu_custom_call.1']
    %11 = vsyncpa [#allocation3], 0
    %s12 = scalar_lea.sflag [#allocation3], 1
    %13 = vsyncpa %s12, 0
    %14 = vsyncpa [#allocation6], 0
    %s15 = scalar_lea.sflag [#allocation6], 1
    %16 = vsyncpa %s15, 0
    %17 = vsyncpa [#allocation9], 0
    %18 = vsyncpa [#allocation4], 0
    %s19 = scalar_lea.sflag [#allocation4], 1
    %20 = vsyncpa %s19, 0
    %21 = vsyncpa [#allocation12], 0
    %s22 = scalar_lea.sflag [#allocation12], 1
    %23 = vsyncpa %s22, 0
    loop: start=0, step=1, limit=4
    $region2: #{tpu_custom_call.1} parent=1 // loop_pre_header
      _
    $region3: #{tpu_custom_call.1} parent=1 // loop_header
      %s25 = sphi 0, %s29
      %p26 = scmp.ge.s32.totalorder %s25, 4
      %s35 = sphi 0, %s37
      %s38 = sphi 0, %s35
      %s39 = sphi 0, %s38
      %s55 = sphi 0, %s39
      %s61 = sphi 0, %s63
      %s64 = sphi 0, %s61
      %s65 = sphi 0, %s64
      %s81 = sphi 0, %s65
      %s85 = sphi 0, %s85
      %s87 = sphi 0, %s85
      %s88 = sphi 0, %s87
      %s102 = sphi 0, %s88
      %s106 = sphi 0, %s106
      %s108 = sphi 0, %s106
      %s109 = sphi 0, %s108
      %s123 = sphi 0, %s109
      %s129 = sphi 0, %s131
      %s132 = sphi 0, %s129
      %s133 = sphi 0, %s132
      %s149 = sphi 0, %s133
      %s155 = sphi 0, %s157
      %s158 = sphi 0, %s155
      %s159 = sphi 0, %s158
      %s175 = sphi 0, %s159
    $region4: #{tpu_custom_call.1} parent=1 // loop_header_branch
      %28 = sbr.rel (%p26) target = $region8
    $region5: #{tpu_custom_call.1} parent=1 // loop_body
      %s30 = ssub.s32 %s25, 1
      %s31 = ssub.s32 %s25, 2
      %s32 = sadd.s32 %s25, 1
      %s33 = ssub.s32 %s25, %s32
      %p34 = scmp.eq.s32.totalorder %s33, 0
      %s36 = sadd.s32 %s35, 1
      %s37 = scalar_select %p34, %s35, %s36
      %p40 = pneg %p34
      %p41 = scmp.eq.s32.totalorder %s25, 1
      %p42 = por %p40, %p41
      %p43 = scmp.ne.s32.totalorder %s35, %s38
      %p44 = scmp.eq.s32.totalorder %s25, 0
      %p45 = por %p43, %p44
      %p46 = scmp.ne.s32.totalorder %s35, %s38
      %p47 = scmp.eq.s32.totalorder %s30, 1
      %p48 = por %p46, %p47
      %p49 = scmp.ne.s32.totalorder %s38, %s39
      %p50 = scmp.eq.s32.totalorder %s30, 0
      %p51 = por %p49, %p50
      %p52 = scmp.ne.s32.totalorder %s38, %s39
      %p53 = scmp.eq.s32.totalorder %s31, 1
      %p54 = por %p52, %p53
      %p56 = scmp.ne.s32.totalorder %s39, %s55
      %p57 = scmp.eq.s32.totalorder %s31, 0
      %p58 = por %p56, %p57
      %s59 = ssub.s32 %s25, %s32
      %p60 = scmp.eq.s32.totalorder %s59, 0
      %s62 = sadd.s32 %s61, 1
      %s63 = scalar_select %p60, %s61, %s62
      %p66 = pneg %p60
      %p67 = scmp.eq.s32.totalorder %s25, 1
      %p68 = por %p66, %p67
      %p69 = scmp.ne.s32.totalorder %s61, %s64
      %p70 = scmp.eq.s32.totalorder %s25, 0
      %p71 = por %p69, %p70
      %p72 = scmp.ne.s32.totalorder %s61, %s64
      %p73 = scmp.eq.s32.totalorder %s30, 1
      %p74 = por %p72, %p73
      %p75 = scmp.ne.s32.totalorder %s64, %s65
      %p76 = scmp.eq.s32.totalorder %s30, 0
      %p77 = por %p75, %p76
      %p78 = scmp.ne.s32.totalorder %s64, %s65
      %p79 = scmp.eq.s32.totalorder %s31, 1
      %p80 = por %p78, %p79
      %p82 = scmp.ne.s32.totalorder %s65, %s81
      %p83 = scmp.eq.s32.totalorder %s31, 0
      %p84 = por %p82, %p83
      %s86 = sadd.s32 %s85, 1
      %p89 = scmp.eq.s32.totalorder %s25, 1
      %p90 = scmp.ne.s32.totalorder %s85, %s87
      %p91 = scmp.eq.s32.totalorder %s25, 0
      %p92 = por %p90, %p91
      %p93 = scmp.ne.s32.totalorder %s85, %s87
      %p94 = scmp.eq.s32.totalorder %s30, 1
      %p95 = por %p93, %p94
      %p96 = scmp.ne.s32.totalorder %s87, %s88
      %p97 = scmp.eq.s32.totalorder %s30, 0
      %p98 = por %p96, %p97
      %p99 = scmp.ne.s32.totalorder %s87, %s88
      %p100 = scmp.eq.s32.totalorder %s31, 1
      %p101 = por %p99, %p100
      %p103 = scmp.ne.s32.totalorder %s88, %s102
      %p104 = scmp.eq.s32.totalorder %s31, 0
      %p105 = por %p103, %p104
      %s107 = sadd.s32 %s106, 1
      %p110 = scmp.eq.s32.totalorder %s25, 1
      %p111 = scmp.ne.s32.totalorder %s106, %s108
      %p112 = scmp.eq.s32.totalorder %s25, 0
      %p113 = por %p111, %p112
      %p114 = scmp.ne.s32.totalorder %s106, %s108
      %p115 = scmp.eq.s32.totalorder %s30, 1
      %p116 = por %p114, %p115
      %p117 = scmp.ne.s32.totalorder %s108, %s109
      %p118 = scmp.eq.s32.totalorder %s30, 0
      %p119 = por %p117, %p118
      %p120 = scmp.ne.s32.totalorder %s108, %s109
      %p121 = scmp.eq.s32.totalorder %s31, 1
      %p122 = por %p120, %p121
      %p124 = scmp.ne.s32.totalorder %s109, %s123
      %p125 = scmp.eq.s32.totalorder %s31, 0
      %p126 = por %p124, %p125
      %s127 = ssub.s32 %s25, %s32
      %p128 = scmp.eq.s32.totalorder %s127, 0
      %s130 = sadd.s32 %s129, 1
      %s131 = scalar_select %p128, %s129, %s130
      %p134 = pneg %p128
      %p135 = scmp.eq.s32.totalorder %s25, 1
      %p136 = por %p134, %p135
      %p137 = scmp.ne.s32.totalorder %s129, %s132
      %p138 = scmp.eq.s32.totalorder %s25, 0
      %p139 = por %p137, %p138
      %p140 = scmp.ne.s32.totalorder %s129, %s132
      %p141 = scmp.eq.s32.totalorder %s30, 1
      %p142 = por %p140, %p141
      %p143 = scmp.ne.s32.totalorder %s132, %s133
      %p144 = scmp.eq.s32.totalorder %s30, 0
      %p145 = por %p143, %p144
      %p146 = scmp.ne.s32.totalorder %s132, %s133
      %p147 = scmp.eq.s32.totalorder %s31, 1
      %p148 = por %p146, %p147
      %p150 = scmp.ne.s32.totalorder %s133, %s149
      %p151 = scmp.eq.s32.totalorder %s31, 0
      %p152 = por %p150, %p151
      %s153 = ssub.s32 %s25, %s32
      %p154 = scmp.eq.s32.totalorder %s153, 0
      %s156 = sadd.s32 %s155, 1
      %s157 = scalar_select %p154, %s155, %s156
      %p160 = pneg %p154
      %p161 = scmp.eq.s32.totalorder %s25, 1
      %p162 = por %p160, %p161
      %p163 = scmp.ne.s32.totalorder %s155, %s158
      %p164 = scmp.eq.s32.totalorder %s25, 0
      %p165 = por %p163, %p164
      %p166 = scmp.ne.s32.totalorder %s155, %s158
      %p167 = scmp.eq.s32.totalorder %s30, 1
      %p168 = por %p166, %p167
      %p169 = scmp.ne.s32.totalorder %s158, %s159
      %p170 = scmp.eq.s32.totalorder %s30, 0
      %p171 = por %p169, %p170
      %p172 = scmp.ne.s32.totalorder %s158, %s159
      %p173 = scmp.eq.s32.totalorder %s31, 1
      %p174 = por %p172, %p173
      %p176 = scmp.ne.s32.totalorder %s159, %s175
      %p177 = scmp.eq.s32.totalorder %s31, 0
      %p178 = por %p176, %p177
      %p179 = scmp.le.s32.totalorder 1, %s25
      %p180 = scmp.lt.s32.totalorder %s25, 3
      %p181 = pnand %p179, %p180
      %p182 = pneg %p181
      // Predicated region
      $region9: #{tpu_custom_call.1} parent=5 // pred_check
        _
      $region10: #{tpu_custom_call.1} parent=5 // pred_check_branch
        %184 = sbr.rel (%p181) target = $region12
      $region11: #{tpu_custom_call.1} parent=5 // pred_region
        %s185 = ssub.s32 %s25, 1
        // Predicated region
        $region13: #{tpu_custom_call.1} parent=11 // pred_check
          %p186 = pneg %p98
        $region14: #{tpu_custom_call.1} parent=11 // pred_check_branch
          %188 = sbr.rel (%p186) target = $region16
        $region15: #{tpu_custom_call.1} parent=11 // pred_region
          %s190 = ssub.s32 512, 512
          %191 = vsyncadd [#allocation6], %s190
          %s192 = sshll.u32 [#allocation7], 4
          %s193 = int_to_ptr.vmem [resolvable:$true] %s192
          %198 = dma.hbm_to_vmem [thread:$0]  %s2, 512, %s193, [#allocation6], 128, 128, 8
        $region16: #{tpu_custom_call.1} parent=11 // pred_fallthru
          _
        // Predicated region
        $region17: #{tpu_custom_call.1} parent=11 // pred_check
          %p199 = pneg %p119
        $region18: #{tpu_custom_call.1} parent=11 // pred_check_branch
          %201 = sbr.rel (%p199) target = $region20
        $region19: #{tpu_custom_call.1} parent=11 // pred_region
          %s203 = ssub.s32 512, 512
          %204 = vsyncadd [#allocation9], %s203
          %s205 = sshll.u32 [#allocation8], 4
          %s206 = int_to_ptr.vmem [resolvable:$true] %s205
          %211 = dma.hbm_to_vmem [thread:$0]  %s3, 512, %s206, [#allocation9], 128, 128, 8
        $region20: #{tpu_custom_call.1} parent=11 // pred_fallthru
          _
      $region12: #{tpu_custom_call.1} parent=5 // pred_fallthru
        _
      %p212 = scmp.lt.s32.totalorder %s25, 2
      // Predicated region
      $region21: #{tpu_custom_call.1} parent=5 // pred_check
        %p213 = pneg %p212
      $region22: #{tpu_custom_call.1} parent=5 // pred_check_branch
        %215 = sbr.rel (%p213) target = $region24
      $region23: #{tpu_custom_call.1} parent=5 // pred_region
        // Predicated region
        $region25: #{tpu_custom_call.1} parent=23 // pred_check
          %p216 = pneg %p45
        $region26: #{tpu_custom_call.1} parent=23 // pred_check_branch
          %218 = sbr.rel (%p216) target = $region28
        $region27: #{tpu_custom_call.1} parent=23 // pred_region
          %s219 = sand.u32 %s35, 1
          %s220 = scalar_lea.sflag [#allocation3], %s219
          %s221 = sand.u32 %s35, 1
          %s222 = smul.addr %s221, 32
          %s223 = scalar_lea.vmem [#allocation2], %s222
          %s225 = ssub.s32 512, 512
          %226 = vsyncadd %s220, %s225
          %s227 = smul.addr %s25, 4
          %s228 = smul.addr %s227, 128
          %s229 = scalar_lea.hbm %s0, %s228
          %s230 = sshll.u32 %s223, 4
          %s231 = int_to_ptr.vmem [resolvable:$true] %s230
          %236 = dma.hbm_to_vmem [thread:$0]  %s229, 512, %s231, %s220, 128, 128, 8
        $region28: #{tpu_custom_call.1} parent=23 // pred_fallthru
          _
        // Predicated region
        $region29: #{tpu_custom_call.1} parent=23 // pred_check
          %p237 = pneg %p71
        $region30: #{tpu_custom_call.1} parent=23 // pred_check_branch
          %239 = sbr.rel (%p237) target = $region32
        $region31: #{tpu_custom_call.1} parent=23 // pred_region
          %s240 = sand.u32 %s25, 1
          %s241 = scalar_lea.sflag [#allocation6], %s240
          %s242 = sand.u32 %s61, 1
          %s243 = smul.addr %s242, 32
          %s244 = scalar_lea.vmem [#allocation5], %s243
          %s246 = ssub.s32 512, 512
          %247 = vsyncadd %s241, %s246
          %s248 = smul.addr %s25, 4
          %s249 = smul.addr %s248, 128
          %s250 = scalar_lea.hbm %s1, %s249
          %s251 = sshll.u32 %s244, 4
          %s252 = int_to_ptr.vmem [resolvable:$true] %s251
          %257 = dma.hbm_to_vmem [thread:$0]  %s250, 512, %s252, %s241, 128, 128, 8
        $region32: #{tpu_custom_call.1} parent=23 // pred_fallthru
          _
      $region24: #{tpu_custom_call.1} parent=5 // pred_fallthru
        _
      %p258 = scmp.le.s32.totalorder 1, %s25
      %p259 = scmp.lt.s32.totalorder %s25, 3
      %p260 = pnand %p258, %p259
      %p261 = pneg %p260
      // Predicated region
      $region33: #{tpu_custom_call.1} parent=5 // pred_check
        _
      $region34: #{tpu_custom_call.1} parent=5 // pred_check_branch
        %263 = sbr.rel (%p260) target = $region36
      $region35: #{tpu_custom_call.1} parent=5 // pred_region
        %s264 = ssub.s32 %s25, 1
        %s265 = sand.u32 %s38, 1
        %s266 = scalar_lea.sflag [#allocation3], %s265
        %s267 = sand.u32 %s38, 1
        %s268 = smul.addr %s267, 32
        %s269 = scalar_lea.vmem [#allocation2], %s268
        // Predicated region
        $region37: #{tpu_custom_call.1} parent=35 // pred_check
          %p270 = pneg %p51
        $region38: #{tpu_custom_call.1} parent=35 // pred_check_branch
          %272 = sbr.rel (%p270) target = $region40
        $region39: #{tpu_custom_call.1} parent=35 // pred_region
          %273 = dma.done %s266, 512
        $region40: #{tpu_custom_call.1} parent=35 // pred_fallthru
          _
        %s274 = sand.u32 %s30, 1
        %s275 = scalar_lea.sflag [#allocation6], %s274
        %s276 = sand.u32 %s64, 1
        %s277 = smul.addr %s276, 32
        %s278 = scalar_lea.vmem [#allocation5], %s277
        // Predicated region
        $region41: #{tpu_custom_call.1} parent=35 // pred_check
          %p279 = pneg %p77
        $region42: #{tpu_custom_call.1} parent=35 // pred_check_branch
          %281 = sbr.rel (%p279) target = $region44
        $region43: #{tpu_custom_call.1} parent=35 // pred_region
          %282 = dma.done %s275, 512
        $region44: #{tpu_custom_call.1} parent=35 // pred_fallthru
          _
        // Predicated region
        $region45: #{tpu_custom_call.1} parent=35 // pred_check
          %p283 = pneg %p98
        $region46: #{tpu_custom_call.1} parent=35 // pred_check_branch
          %285 = sbr.rel (%p283) target = $region48
        $region47: #{tpu_custom_call.1} parent=35 // pred_region
          %286 = dma.done [#allocation6], 512
        $region48: #{tpu_custom_call.1} parent=35 // pred_fallthru
          _
        // Predicated region
        $region49: #{tpu_custom_call.1} parent=35 // pred_check
          %p287 = pneg %p119
        $region50: #{tpu_custom_call.1} parent=35 // pred_check_branch
          %289 = sbr.rel (%p287) target = $region52
        $region51: #{tpu_custom_call.1} parent=35 // pred_region
          %290 = dma.done [#allocation9], 512
        $region52: #{tpu_custom_call.1} parent=35 // pred_fallthru
          _
        %s291 = sand.u32 %s38, 1
        %s292 = scalar_lea.sflag [#allocation3], %s291
        %s293 = sand.u32 %s38, 1
        %s294 = smul.addr %s293, 32
        %s295 = scalar_lea.vmem [#allocation2], %s294
        %p296 = pneg %p51
        %p297 = pneg %p48
        %s298 = sand.u32 %s30, 1
        %s299 = scalar_lea.sflag [#allocation6], %s298
        %s300 = sand.u32 %s64, 1
        %s301 = smul.addr %s300, 32
        %s302 = scalar_lea.vmem [#allocation5], %s301
        %p303 = pneg %p77
        %p304 = pneg %p74
        %p305 = pneg %p98
        %p306 = pneg %p95
        %p307 = pneg %p119
        %p308 = pneg %p116
        %p309 = pneg %p145
        %p310 = pneg %p142
        %s311 = sand.u32 %s132, 1
        %s312 = scalar_lea.sflag [#allocation4], %s311
        %s313 = sand.u32 %s132, 1
        %s314 = smul.addr %s313, 8
        %s315 = scalar_lea.vmem [#allocation10], %s314
        %p316 = pneg %p171
        %p317 = pneg %p168
        %s318 = sand.u32 %s158, 1
        %s319 = scalar_lea.sflag [#allocation12], %s318
        %s320 = sand.u32 %s158, 1
        %s321 = smul.addr %s320, 8
        %s322 = scalar_lea.vmem [#allocation11], %s321
        %v324 = vld [vmem:[%s269] sm:$0xff]
        %v325 = vld [vmem:[%s269 + $0x8] sm:$0xff]
        %v326 = vld [vmem:[%s269 + $0x10] sm:$0xff]
        %v327 = vld [vmem:[%s269 + $0x18] sm:$0xff]
        %v328 = vld [vmem:[%s278] sm:$0xff]
        %v329 = vld [vmem:[%s278 + $0x8] sm:$0xff]
        %v330 = vld [vmem:[%s278 + $0x10] sm:$0xff]
        %v331 = vld [vmem:[%s278 + $0x18] sm:$0xff]
        %v332 = vlog2.pop %v324
        %v333 = vmul.f32 %v332, 0.6931472
        %v334 = vlog2.pop %v325
        %v335 = vmul.f32 %v334, 0.6931472
        %v336 = vlog2.pop %v326
        %v337 = vmul.f32 %v336, 0.6931472
        %v338 = vlog2.pop %v327
        %v339 = vmul.f32 %v338, 0.6931472
        %v340 = vmax.f32 %v333, -100.0
        %v341 = vmax.f32 %v335, -100.0
        %v342 = vmax.f32 %v337, -100.0
        %v343 = vmax.f32 %v339, -100.0
        %v344 = vsub.f32 1.0, %v324
        %v345 = vsub.f32 1.0, %v325
        %v346 = vsub.f32 1.0, %v326
        %v347 = vsub.f32 1.0, %v327
        %v348 = vlog2.pop %v344
        %v349 = vmul.f32 %v348, 0.6931472
        %v350 = vlog2.pop %v345
        %v351 = vmul.f32 %v350, 0.6931472
        %v352 = vlog2.pop %v346
        %v353 = vmul.f32 %v352, 0.6931472
        %v354 = vlog2.pop %v347
        %v355 = vmul.f32 %v354, 0.6931472
        %v356 = vmax.f32 %v349, -100.0
        %v357 = vmax.f32 %v351, -100.0
        %v358 = vmax.f32 %v353, -100.0
        %v359 = vmax.f32 %v355, -100.0
        %v360 = vmul.f32 %v328, %v340
        %v361 = vmul.f32 %v329, %v341
        %v362 = vmul.f32 %v330, %v342
        %v363 = vmul.f32 %v331, %v343
        %v364 = vsub.f32 1.0, %v328
        %v365 = vsub.f32 1.0, %v329
        %v366 = vsub.f32 1.0, %v330
        %v367 = vsub.f32 1.0, %v331
        %v368 = vmul.f32 %v364, %v356
        %v369 = vmul.f32 %v365, %v357
        %v370 = vmul.f32 %v366, %v358
        %v371 = vmul.f32 %v367, %v359
        %v372 = vadd.f32 %v360, %v368
        %v373 = vadd.f32 %v361, %v369
        %v374 = vadd.f32 %v362, %v370
        %v375 = vadd.f32 %v363, %v371
        %v376 = vsub.f32 0.0, %v372
        %v377 = vsub.f32 0.0, %v373
        %v378 = vsub.f32 0.0, %v374
        %v379 = vsub.f32 0.0, %v375
        %v380 = vmul.f32 %v324, %v324
        %v381 = vmul.f32 %v325, %v325
        %v382 = vmul.f32 %v326, %v326
        %v383 = vmul.f32 %v327, %v327
        %v384 = vmul.f32 %v328, %v328
        %v385 = vmul.f32 %v329, %v329
        %v386 = vmul.f32 %v330, %v330
        %v387 = vmul.f32 %v331, %v331
        %v388 = vmul.f32 %v324, %v328
        %v389 = vmul.f32 %v325, %v329
        %v390 = vmul.f32 %v326, %v330
        %v391 = vmul.f32 %v327, %v331
        %v392 = vld [vmem:[#allocation8] sm:$0xff]
        %v393 = vld [vmem:[#allocation8 + $0x8] sm:$0xff]
        %v394 = vld [vmem:[#allocation8 + $0x10] sm:$0xff]
        %v395 = vld [vmem:[#allocation8 + $0x18] sm:$0xff]
        %v396 = vpack.c.bf16 %v393, %v392
        %v397 = vpack.c.bf16 %v395, %v394
        %v398 = vunpack.c.l.bf16 %v396
        %v399 = vunpack.c.h.bf16 %v396
        %v400 = vunpack.c.l.bf16 %v397
        %v401 = vunpack.c.h.bf16 %v397
        %v402 = vsub.f32 %v392, %v398
        %v403 = vsub.f32 %v393, %v399
        %v404 = vsub.f32 %v394, %v400
        %v405 = vsub.f32 %v395, %v401
        %v406 = vpack.c.bf16 %v403, %v402
        %v407 = vpack.c.bf16 %v405, %v404
        %v408 = vpack.c.bf16 %v325, %v324
        %v409 = vpack.c.bf16 %v327, %v326
        %v410 = vpack.c.bf16 %v329, %v328
        %v411 = vpack.c.bf16 %v331, %v330
        %v412 = vpack.c.bf16 %v381, %v380
        %v413 = vpack.c.bf16 %v383, %v382
        %v414 = vpack.c.bf16 %v385, %v384
        %v415 = vpack.c.bf16 %v387, %v386
        %v416 = vpack.c.bf16 %v389, %v388
        %v417 = vpack.c.bf16 %v391, %v390
        %v418 = vunpack.c.l.bf16 %v408
        %v419 = vunpack.c.h.bf16 %v408
        %v420 = vunpack.c.l.bf16 %v409
        %v421 = vunpack.c.h.bf16 %v409
        %v422 = vunpack.c.l.bf16 %v410
        %v423 = vunpack.c.h.bf16 %v410
        %v424 = vunpack.c.l.bf16 %v411
        %v425 = vunpack.c.h.bf16 %v411
        %v426 = vunpack.c.l.bf16 %v412
        %v427 = vunpack.c.h.bf16 %v412
        %v428 = vunpack.c.l.bf16 %v413
        %v429 = vunpack.c.h.bf16 %v413
        %v430 = vunpack.c.l.bf16 %v414
        %v431 = vunpack.c.h.bf16 %v414
        %v432 = vunpack.c.l.bf16 %v415
        %v433 = vunpack.c.h.bf16 %v415
        %v434 = vunpack.c.l.bf16 %v416
        %v435 = vunpack.c.h.bf16 %v416
        %v436 = vunpack.c.l.bf16 %v417
        %v437 = vunpack.c.h.bf16 %v417
        %v438 = vsub.f32 %v324, %v418
        %v439 = vsub.f32 %v325, %v419
        %v440 = vsub.f32 %v326, %v420
        %v441 = vsub.f32 %v327, %v421
        %v442 = vsub.f32 %v328, %v422
        %v443 = vsub.f32 %v329, %v423
        %v444 = vsub.f32 %v330, %v424
        %v445 = vsub.f32 %v331, %v425
        %v446 = vsub.f32 %v380, %v426
        %v447 = vsub.f32 %v381, %v427
        %v448 = vsub.f32 %v382, %v428
        %v449 = vsub.f32 %v383, %v429
        %v450 = vsub.f32 %v384, %v430
        %v451 = vsub.f32 %v385, %v431
        %v452 = vsub.f32 %v386, %v432
        %v453 = vsub.f32 %v387, %v433
        %v454 = vsub.f32 %v388, %v434
        %v455 = vsub.f32 %v389, %v435
        %v456 = vsub.f32 %v390, %v436
        %v457 = vsub.f32 %v391, %v437
        %v458 = vpack.c.bf16 %v439, %v438
        %v459 = vpack.c.bf16 %v441, %v440
        %v460 = vpack.c.bf16 %v443, %v442
        %v461 = vpack.c.bf16 %v445, %v444
        %v462 = vpack.c.bf16 %v447, %v446
        %v463 = vpack.c.bf16 %v449, %v448
        %v464 = vpack.c.bf16 %v451, %v450
        %v465 = vpack.c.bf16 %v453, %v452
        %v466 = vpack.c.bf16 %v455, %v454
        %v467 = vpack.c.bf16 %v457, %v456
        %vm468 = vcmask 261120
        %v470 = vsel %vm468, %v408, 0
        %v473 = vsel %vm468, %v409, 0
        %v476 = vsel %vm468, %v410, 0
        %v479 = vsel %vm468, %v411, 0
        %v482 = vsel %vm468, %v412, 0
        %v485 = vsel %vm468, %v413, 0
        %v488 = vsel %vm468, %v414, 0
        %v491 = vsel %vm468, %v415, 0
        %v494 = vsel %vm468, %v416, 0
        %v497 = vsel %vm468, %v417, 0
        %499 = vmatprep.subr.bf16.mxu0 0
        %500 = vmatpush1.bf16.msra.mxu0 %v406
        %501 = vmatprep.subr.bf16.mxu0 0
        %502 = vmatpush1.bf16.msra.mxu0 %v407
        %503 = vmatprep.subr.bf16.mxu0 0
        %504 = vmatpush1.bf16.msra.mxu0 0
        %505 = vmatprep.subr.bf16.mxu0 0
        %506 = vmatpush1.bf16.msra.mxu0 0
        %507 = vmatprep.subr.bf16.mxu0 0
        %508 = vmatpush1.bf16.msra.mxu0 0
        %509 = vmatprep.subr.bf16.mxu0 0
        %510 = vmatpush1.bf16.msra.mxu0 0
        %511 = vmatprep.subr.bf16.mxu0 0
        %512 = vmatpush1.bf16.msra.mxu0 0
        %513 = vmatprep.subr.bf16.mxu0 0
        %514 = vmatpush1.bf16.msra.mxu0 0
        %515 = vmatprep.subr.bf16.mxu0 0
        %516 = vmatpush1.bf16.msra.mxu0 0
        %517 = vmatprep.subr.bf16.mxu0 0
        %518 = vmatpush1.bf16.msra.mxu0 0
        %519 = vmatprep.subr.bf16.mxu0 0
        %520 = vmatpush1.bf16.msra.mxu0 0
        %521 = vmatprep.subr.bf16.mxu0 0
        %522 = vmatpush1.bf16.msra.mxu0 0
        %523 = vmatprep.subr.bf16.mxu0 0
        %524 = vmatpush1.bf16.msra.mxu0 0
        %525 = vmatprep.subr.bf16.mxu0 0
        %526 = vmatpush1.bf16.msra.mxu0 0
        %527 = vmatprep.subr.bf16.mxu0 0
        %528 = vmatpush1.bf16.msra.mxu0 0
        %529 = vmatprep.subr.bf16.mxu0 0
        %530 = vmatpush1.bf16.msra.mxu0 0
        %531 = vmatprep.mubr.bf16.mxu0 0
        %532 = vmatmul.mubr.bf16.gmra.mrb[0].mxu0 %v470
        %v533 = vpop.f32.mrb[0].mxu0
        %v534 = vadd.f32 0.0, %v533
        %v535 = vpop.f32.mrb[0].mxu0
        %v536 = vpop.f32.mrb[0].mxu0
        %v537 = vadd.f32 0.0, %v536
        %v538 = vpop.f32.mrb[0].mxu0
        %539 = vmatprep.mubr.bf16.mxu0 0
        %540 = vmatmul.mubr.bf16.gmra.mrb[0].mxu0 %v473
        %v541 = vpop.f32.mrb[0].mxu0
        %v542 = vadd.f32 0.0, %v541
        %v543 = vpop.f32.mrb[0].mxu0
        %v544 = vpop.f32.mrb[0].mxu0
        %v545 = vadd.f32 0.0, %v544
        %v546 = vpop.f32.mrb[0].mxu0
        %547 = vmatprep.mubr.bf16.mxu0 0
        %548 = vmatmul.mubr.bf16.gmra.mrb[0].mxu0 %v476
        %v549 = vpop.f32.mrb[0].mxu0
        %v550 = vadd.f32 0.0, %v549
        %v551 = vpop.f32.mrb[0].mxu0
        %v552 = vpop.f32.mrb[0].mxu0
        %v553 = vadd.f32 0.0, %v552
        %v554 = vpop.f32.mrb[0].mxu0
        %555 = vmatprep.mubr.bf16.mxu0 0
        %556 = vmatmul.mubr.bf16.gmra.mrb[0].mxu0 %v479
        %v557 = vpop.f32.mrb[0].mxu0
        %v558 = vadd.f32 0.0, %v557
        %v559 = vpop.f32.mrb[0].mxu0
        %v560 = vpop.f32.mrb[0].mxu0
        %v561 = vadd.f32 0.0, %v560
        %v562 = vpop.f32.mrb[0].mxu0
        %563 = vmatprep.mubr.bf16.mxu0 0
        %564 = vmatmul.mubr.bf16.gmra.mrb[0].mxu0 %v482
        %v565 = vpop.f32.mrb[0].mxu0
        %v566 = vadd.f32 0.0, %v565
        %v567 = vpop.f32.mrb[0].mxu0
        %v568 = vpop.f32.mrb[0].mxu0
        %v569 = vadd.f32 0.0, %v568
        %v570 = vpop.f32.mrb[0].mxu0
        %571 = vmatprep.mubr.bf16.mxu0 0
        %572 = vmatmul.mubr.bf16.gmra.mrb[0].mxu0 %v485
        %v573 = vpop.f32.mrb[0].mxu0
        %v574 = vadd.f32 0.0, %v573
        %v575 = vpop.f32.mrb[0].mxu0
        %v576 = vpop.f32.mrb[0].mxu0
        %v577 = vadd.f32 0.0, %v576
        %v578 = vpop.f32.mrb[0].mxu0
        %579 = vmatprep.mubr.bf16.mxu0 0
        %580 = vmatmul.mubr.bf16.gmra.mrb[0].mxu0 %v488
        %v581 = vpop.f32.mrb[0].mxu0
        %v582 = vadd.f32 0.0, %v581
        %v583 = vpop.f32.mrb[0].mxu0
        %v584 = vpop.f32.mrb[0].mxu0
        %v585 = vadd.f32 0.0, %v584
        %v586 = vpop.f32.mrb[0].mxu0
        %587 = vmatprep.mubr.bf16.mxu0 0
        %588 = vmatmul.mubr.bf16.gmra.mrb[0].mxu0 %v491
        %v589 = vpop.f32.mrb[0].mxu0
        %v590 = vadd.f32 0.0, %v589
        %v591 = vpop.f32.mrb[0].mxu0
        %v592 = vpop.f32.mrb[0].mxu0
        %v593 = vadd.f32 0.0, %v592
        %v594 = vpop.f32.mrb[0].mxu0
        %595 = vmatprep.mubr.bf16.mxu0 0
        %596 = vmatmul.mubr.bf16.gmra.mrb[0].mxu0 %v494
        %v597 = vpop.f32.mrb[0].mxu0
        %v598 = vadd.f32 0.0, %v597
        %v599 = vpop.f32.mrb[0].mxu0
        %v600 = vpop.f32.mrb[0].mxu0
        %v601 = vadd.f32 0.0, %v600
        %v602 = vpop.f32.mrb[0].mxu0
        %603 = vmatprep.mubr.bf16.mxu0 0
        %604 = vmatmul.mubr.bf16.gmra.mrb[0].mxu0 %v497
        %v605 = vpop.f32.mrb[0].mxu0
        %v606 = vadd.f32 0.0, %v605
        %v607 = vpop.f32.mrb[0].mxu0
        %v608 = vpop.f32.mrb[0].mxu0
        %v609 = vadd.f32 0.0, %v608
        %v610 = vpop.f32.mrb[0].mxu0
        %611 = vdwg.mxu0
        %612 = vmatprep.subr.bf16.mxu0 0
        %613 = vmatpush1.bf16.msra.mxu0 %v396
        %614 = vmatprep.subr.bf16.mxu0 0
        %615 = vmatpush1.bf16.msra.mxu0 %v397
        %616 = vmatprep.subr.bf16.mxu0 0
        %617 = vmatpush1.bf16.msra.mxu0 0
        %618 = vmatprep.subr.bf16.mxu0 0
        %619 = vmatpush1.bf16.msra.mxu0 0
        %620 = vmatprep.subr.bf16.mxu0 0
        %621 = vmatpush1.bf16.msra.mxu0 0
        %622 = vmatprep.subr.bf16.mxu0 0
        %623 = vmatpush1.bf16.msra.mxu0 0
        %624 = vmatprep.subr.bf16.mxu0 0
        %625 = vmatpush1.bf16.msra.mxu0 0
        %626 = vmatprep.subr.bf16.mxu0 0
        %627 = vmatpush1.bf16.msra.mxu0 0
        %628 = vmatprep.subr.bf16.mxu0 0
        %629 = vmatpush1.bf16.msra.mxu0 0
        %630 = vmatprep.subr.bf16.mxu0 0
        %631 = vmatpush1.bf16.msra.mxu0 0
        %632 = vmatprep.subr.bf16.mxu0 0
        %633 = vmatpush1.bf16.msra.mxu0 0
        %634 = vmatprep.subr.bf16.mxu0 0
        %635 = vmatpush1.bf16.msra.mxu0 0
        %636 = vmatprep.subr.bf16.mxu0 0
        %637 = vmatpush1.bf16.msra.mxu0 0
        %638 = vmatprep.subr.bf16.mxu0 0
        %639 = vmatpush1.bf16.msra.mxu0 0
        %640 = vmatprep.subr.bf16.mxu0 0
        %641 = vmatpush1.bf16.msra.mxu0 0
        %642 = vmatprep.subr.bf16.mxu0 0
        %643 = vmatpush1.bf16.msra.mxu0 0
        %644 = vmatprep.mubr.bf16.mxu0 0
        %645 = vmatmul.mubr.bf16.gmra.mrb[0].mxu0 %v470
        %v646 = vpop.f32.mrb[0].mxu0
        %v647 = vadd.f32 %v534, %v646
        %v648 = vpop.f32.mrb[0].mxu0
        %v649 = vpop.f32.mrb[0].mxu0
        %v650 = vadd.f32 %v537, %v649
        %v651 = vpop.f32.mrb[0].mxu0
        %652 = vmatprep.mubr.bf16.mxu0 0
        %653 = vmatmul.mubr.bf16.gmra.mrb[0].mxu0 %v473
        %v654 = vpop.f32.mrb[0].mxu0
        %v655 = vadd.f32 %v542, %v654
        %v656 = vpop.f32.mrb[0].mxu0
        %v657 = vpop.f32.mrb[0].mxu0
        %v658 = vadd.f32 %v545, %v657
        %v659 = vpop.f32.mrb[0].mxu0
        %660 = vmatprep.mubr.bf16.mxu0 0
        %661 = vmatmul.mubr.bf16.gmra.mrb[0].mxu0 %v476
        %v662 = vpop.f32.mrb[0].mxu0
        %v663 = vadd.f32 %v550, %v662
        %v664 = vpop.f32.mrb[0].mxu0
        %v665 = vpop.f32.mrb[0].mxu0
        %v666 = vadd.f32 %v553, %v665
        %v667 = vpop.f32.mrb[0].mxu0
        %668 = vmatprep.mubr.bf16.mxu0 0
        %669 = vmatmul.mubr.bf16.gmra.mrb[0].mxu0 %v479
        %v670 = vpop.f32.mrb[0].mxu0
        %v671 = vadd.f32 %v558, %v670
        %v672 = vpop.f32.mrb[0].mxu0
        %v673 = vpop.f32.mrb[0].mxu0
        %v674 = vadd.f32 %v561, %v673
        %v675 = vpop.f32.mrb[0].mxu0
        %676 = vmatprep.mubr.bf16.mxu0 0
        %677 = vmatmul.mubr.bf16.gmra.mrb[0].mxu0 %v482
        %v678 = vpop.f32.mrb[0].mxu0
        %v679 = vadd.f32 %v566, %v678
        %v680 = vpop.f32.mrb[0].mxu0
        %v681 = vpop.f32.mrb[0].mxu0
        %v682 = vadd.f32 %v569, %v681
        %v683 = vpop.f32.mrb[0].mxu0
        %684 = vmatprep.mubr.bf16.mxu0 0
        %685 = vmatmul.mubr.bf16.gmra.mrb[0].mxu0 %v485
        %v686 = vpop.f32.mrb[0].mxu0
        %v687 = vadd.f32 %v574, %v686
        %v688 = vpop.f32.mrb[0].mxu0
        %v689 = vpop.f32.mrb[0].mxu0
        %v690 = vadd.f32 %v577, %v689
        %v691 = vpop.f32.mrb[0].mxu0
        %692 = vmatprep.mubr.bf16.mxu0 0
        %693 = vmatmul.mubr.bf16.gmra.mrb[0].mxu0 %v488
        %v694 = vpop.f32.mrb[0].mxu0
        %v695 = vadd.f32 %v582, %v694
        %v696 = vpop.f32.mrb[0].mxu0
        %v697 = vpop.f32.mrb[0].mxu0
        %v698 = vadd.f32 %v585, %v697
        %v699 = vpop.f32.mrb[0].mxu0
        %700 = vmatprep.mubr.bf16.mxu0 0
        %701 = vmatmul.mubr.bf16.gmra.mrb[0].mxu0 %v491
        %v702 = vpop.f32.mrb[0].mxu0
        %v703 = vadd.f32 %v590, %v702
        %v704 = vpop.f32.mrb[0].mxu0
        %v705 = vpop.f32.mrb[0].mxu0
        %v706 = vadd.f32 %v593, %v705
        %v707 = vpop.f32.mrb[0].mxu0
        %708 = vmatprep.mubr.bf16.mxu0 0
        %709 = vmatmul.mubr.bf16.gmra.mrb[0].mxu0 %v494
        %v710 = vpop.f32.mrb[0].mxu0
        %v711 = vadd.f32 %v598, %v710
        %v712 = vpop.f32.mrb[0].mxu0
        %v713 = vpop.f32.mrb[0].mxu0
        %v714 = vadd.f32 %v601, %v713
        %v715 = vpop.f32.mrb[0].mxu0
        %716 = vmatprep.mubr.bf16.mxu0 0
        %717 = vmatmul.mubr.bf16.gmra.mrb[0].mxu0 %v497
        %v718 = vpop.f32.mrb[0].mxu0
        %v719 = vadd.f32 %v606, %v718
        %v720 = vpop.f32.mrb[0].mxu0
        %v721 = vpop.f32.mrb[0].mxu0
        %v722 = vadd.f32 %v609, %v721
        %v723 = vpop.f32.mrb[0].mxu0
        %724 = vdwg.mxu0
        %v726 = vsel %vm468, %v458, 0
        %v729 = vsel %vm468, %v459, 0
        %v732 = vsel %vm468, %v460, 0
        %v735 = vsel %vm468, %v461, 0
        %v738 = vsel %vm468, %v462, 0
        %v741 = vsel %vm468, %v463, 0
        %v744 = vsel %vm468, %v464, 0
        %v747 = vsel %vm468, %v465, 0
        %v750 = vsel %vm468, %v466, 0
        %v753 = vsel %vm468, %v467, 0
        %755 = vmatprep.subr.bf16.mxu0 0
        %756 = vmatpush1.bf16.msra.mxu0 %v396
        %757 = vmatprep.subr.bf16.mxu0 0
        %758 = vmatpush1.bf16.msra.mxu0 %v397
        %759 = vmatprep.subr.bf16.mxu0 0
        %760 = vmatpush1.bf16.msra.mxu0 0
        %761 = vmatprep.subr.bf16.mxu0 0
        %762 = vmatpush1.bf16.msra.mxu0 0
        %763 = vmatprep.subr.bf16.mxu0 0
        %764 = vmatpush1.bf16.msra.mxu0 0
        %765 = vmatprep.subr.bf16.mxu0 0
        %766 = vmatpush1.bf16.msra.mxu0 0
        %767 = vmatprep.subr.bf16.mxu0 0
        %768 = vmatpush1.bf16.msra.mxu0 0
        %769 = vmatprep.subr.bf16.mxu0 0
        %770 = vmatpush1.bf16.msra.mxu0 0
        %771 = vmatprep.subr.bf16.mxu0 0
        %772 = vmatpush1.bf16.msra.mxu0 0
        %773 = vmatprep.subr.bf16.mxu0 0
        %774 = vmatpush1.bf16.msra.mxu0 0
        %775 = vmatprep.subr.bf16.mxu0 0
        %776 = vmatpush1.bf16.msra.mxu0 0
        %777 = vmatprep.subr.bf16.mxu0 0
        %778 = vmatpush1.bf16.msra.mxu0 0
        %779 = vmatprep.subr.bf16.mxu0 0
        %780 = vmatpush1.bf16.msra.mxu0 0
        %781 = vmatprep.subr.bf16.mxu0 0
        %782 = vmatpush1.bf16.msra.mxu0 0
        %783 = vmatprep.subr.bf16.mxu0 0
        %784 = vmatpush1.bf16.msra.mxu0 0
        %785 = vmatprep.subr.bf16.mxu0 0
        %786 = vmatpush1.bf16.msra.mxu0 0
        %787 = vmatprep.mubr.bf16.mxu0 0
        %788 = vmatmul.mubr.bf16.gmra.mrb[0].mxu0 %v726
        %v789 = vpop.f32.mrb[0].mxu0
        %v790 = vadd.f32 0.0, %v789
        %v791 = vpop.f32.mrb[0].mxu0
        %v792 = vpop.f32.mrb[0].mxu0
        %v793 = vadd.f32 0.0, %v792
        %v794 = vpop.f32.mrb[0].mxu0
        %795 = vmatprep.mubr.bf16.mxu0 0
        %796 = vmatmul.mubr.bf16.gmra.mrb[0].mxu0 %v729
        %v797 = vpop.f32.mrb[0].mxu0
        %v798 = vadd.f32 0.0, %v797
        %v799 = vpop.f32.mrb[0].mxu0
        %v800 = vpop.f32.mrb[0].mxu0
        %v801 = vadd.f32 0.0, %v800
        %v802 = vpop.f32.mrb[0].mxu0
        %803 = vmatprep.mubr.bf16.mxu0 0
        %804 = vmatmul.mubr.bf16.gmra.mrb[0].mxu0 %v732
        %v805 = vpop.f32.mrb[0].mxu0
        %v806 = vadd.f32 0.0, %v805
        %v807 = vpop.f32.mrb[0].mxu0
        %v808 = vpop.f32.mrb[0].mxu0
        %v809 = vadd.f32 0.0, %v808
        %v810 = vpop.f32.mrb[0].mxu0
        %811 = vmatprep.mubr.bf16.mxu0 0
        %812 = vmatmul.mubr.bf16.gmra.mrb[0].mxu0 %v735
        %v813 = vpop.f32.mrb[0].mxu0
        %v814 = vadd.f32 0.0, %v813
        %v815 = vpop.f32.mrb[0].mxu0
        %v816 = vpop.f32.mrb[0].mxu0
        %v817 = vadd.f32 0.0, %v816
        %v818 = vpop.f32.mrb[0].mxu0
        %819 = vmatprep.mubr.bf16.mxu0 0
        %820 = vmatmul.mubr.bf16.gmra.mrb[0].mxu0 %v738
        %v821 = vpop.f32.mrb[0].mxu0
        %v822 = vadd.f32 0.0, %v821
        %v823 = vpop.f32.mrb[0].mxu0
        %v824 = vpop.f32.mrb[0].mxu0
        %v825 = vadd.f32 0.0, %v824
        %v826 = vpop.f32.mrb[0].mxu0
        %827 = vmatprep.mubr.bf16.mxu0 0
        %828 = vmatmul.mubr.bf16.gmra.mrb[0].mxu0 %v741
        %v829 = vpop.f32.mrb[0].mxu0
        %v830 = vadd.f32 0.0, %v829
        %v831 = vpop.f32.mrb[0].mxu0
        %v832 = vpop.f32.mrb[0].mxu0
        %v833 = vadd.f32 0.0, %v832
        %v834 = vpop.f32.mrb[0].mxu0
        %835 = vmatprep.mubr.bf16.mxu0 0
        %836 = vmatmul.mubr.bf16.gmra.mrb[0].mxu0 %v744
        %v837 = vpop.f32.mrb[0].mxu0
        %v838 = vadd.f32 0.0, %v837
        %v839 = vpop.f32.mrb[0].mxu0
        %v840 = vpop.f32.mrb[0].mxu0
        %v841 = vadd.f32 0.0, %v840
        %v842 = vpop.f32.mrb[0].mxu0
        %843 = vmatprep.mubr.bf16.mxu0 0
        %844 = vmatmul.mubr.bf16.gmra.mrb[0].mxu0 %v747
        %v845 = vpop.f32.mrb[0].mxu0
        %v846 = vadd.f32 0.0, %v845
        %v847 = vpop.f32.mrb[0].mxu0
        %v848 = vpop.f32.mrb[0].mxu0
        %v849 = vadd.f32 0.0, %v848
        %v850 = vpop.f32.mrb[0].mxu0
        %851 = vmatprep.mubr.bf16.mxu0 0
        %852 = vmatmul.mubr.bf16.gmra.mrb[0].mxu0 %v750
        %v853 = vpop.f32.mrb[0].mxu0
        %v854 = vadd.f32 0.0, %v853
        %v855 = vpop.f32.mrb[0].mxu0
        %v856 = vpop.f32.mrb[0].mxu0
        %v857 = vadd.f32 0.0, %v856
        %v858 = vpop.f32.mrb[0].mxu0
        %859 = vmatprep.mubr.bf16.mxu0 0
        %860 = vmatmul.mubr.bf16.gmra.mrb[0].mxu0 %v753
        %v861 = vpop.f32.mrb[0].mxu0
        %v862 = vadd.f32 0.0, %v861
        %v863 = vpop.f32.mrb[0].mxu0
        %v864 = vpop.f32.mrb[0].mxu0
        %v865 = vadd.f32 0.0, %v864
        %v866 = vpop.f32.mrb[0].mxu0
        %867 = vdwg.mxu0
        %v868 = vadd.f32 %v647, %v790
        %v869 = vadd.f32 %v650, %v793
        %v870 = vadd.f32 %v655, %v798
        %v871 = vadd.f32 %v658, %v801
        %v872 = vadd.f32 %v663, %v806
        %v873 = vadd.f32 %v666, %v809
        %v874 = vadd.f32 %v671, %v814
        %v875 = vadd.f32 %v674, %v817
        %v876 = vadd.f32 %v679, %v822
        %v877 = vadd.f32 %v682, %v825
        %v878 = vadd.f32 %v687, %v830
        %v879 = vadd.f32 %v690, %v833
        %v880 = vadd.f32 %v695, %v838
        %v881 = vadd.f32 %v698, %v841
        %v882 = vadd.f32 %v703, %v846
        %v883 = vadd.f32 %v706, %v849
        %v884 = vadd.f32 %v711, %v854
        %v885 = vadd.f32 %v714, %v857
        %v886 = vadd.f32 %v719, %v862
        %v887 = vadd.f32 %v722, %v865
        %v888 = vld [vmem:[#allocation7] sm:$0xff]
        %v889 = vld [vmem:[#allocation7 + $0x8] sm:$0xff]
        %v890 = vld [vmem:[#allocation7 + $0x10] sm:$0xff]
        %v891 = vld [vmem:[#allocation7 + $0x18] sm:$0xff]
        %v892 = vpack.c.bf16 %v889, %v888
        %v893 = vpack.c.bf16 %v891, %v890
        %v894 = vunpack.c.l.bf16 %v892
        %v895 = vunpack.c.h.bf16 %v892
        %v896 = vunpack.c.l.bf16 %v893
        %v897 = vunpack.c.h.bf16 %v893
        %v898 = vsub.f32 %v888, %v894
        %v899 = vsub.f32 %v889, %v895
        %v900 = vsub.f32 %v890, %v896
        %v901 = vsub.f32 %v891, %v897
        %v902 = vpack.c.bf16 %v899, %v898
        %v903 = vpack.c.bf16 %v901, %v900
        %v904 = vpack.c.bf16 %v869, %v868
        %v905 = vpack.c.bf16 %v871, %v870
        %v906 = vpack.c.bf16 %v873, %v872
        %v907 = vpack.c.bf16 %v875, %v874
        %v908 = vpack.c.bf16 %v877, %v876
        %v909 = vpack.c.bf16 %v879, %v878
        %v910 = vpack.c.bf16 %v881, %v880
        %v911 = vpack.c.bf16 %v883, %v882
        %v912 = vpack.c.bf16 %v885, %v884
        %v913 = vpack.c.bf16 %v887, %v886
        %v914 = vunpack.c.l.bf16 %v904
        %v915 = vunpack.c.h.bf16 %v904
        %v916 = vunpack.c.l.bf16 %v905
        %v917 = vunpack.c.h.bf16 %v905
        %v918 = vunpack.c.l.bf16 %v906
        %v919 = vunpack.c.h.bf16 %v906
        %v920 = vunpack.c.l.bf16 %v907
        %v921 = vunpack.c.h.bf16 %v907
        %v922 = vunpack.c.l.bf16 %v908
        %v923 = vunpack.c.h.bf16 %v908
        %v924 = vunpack.c.l.bf16 %v909
        %v925 = vunpack.c.h.bf16 %v909
        %v926 = vunpack.c.l.bf16 %v910
        %v927 = vunpack.c.h.bf16 %v910
        %v928 = vunpack.c.l.bf16 %v911
        %v929 = vunpack.c.h.bf16 %v911
        %v930 = vunpack.c.l.bf16 %v912
        %v931 = vunpack.c.h.bf16 %v912
        %v932 = vunpack.c.l.bf16 %v913
        %v933 = vunpack.c.h.bf16 %v913
        %v934 = vsub.f32 %v868, %v914
        %v935 = vsub.f32 %v869, %v915
        %v936 = vsub.f32 %v870, %v916
        %v937 = vsub.f32 %v871, %v917
        %v938 = vsub.f32 %v872, %v918
        %v939 = vsub.f32 %v873, %v919
        %v940 = vsub.f32 %v874, %v920
        %v941 = vsub.f32 %v875, %v921
        %v942 = vsub.f32 %v876, %v922
        %v943 = vsub.f32 %v877, %v923
        %v944 = vsub.f32 %v878, %v924
        %v945 = vsub.f32 %v879, %v925
        %v946 = vsub.f32 %v880, %v926
        %v947 = vsub.f32 %v881, %v927
        %v948 = vsub.f32 %v882, %v928
        %v949 = vsub.f32 %v883, %v929
        %v950 = vsub.f32 %v884, %v930
        %v951 = vsub.f32 %v885, %v931
        %v952 = vsub.f32 %v886, %v932
        %v953 = vsub.f32 %v887, %v933
        %v954 = vpack.c.bf16 %v935, %v934
        %v955 = vpack.c.bf16 %v937, %v936
        %v956 = vpack.c.bf16 %v939, %v938
        %v957 = vpack.c.bf16 %v941, %v940
        %v958 = vpack.c.bf16 %v943, %v942
        %v959 = vpack.c.bf16 %v945, %v944
        %v960 = vpack.c.bf16 %v947, %v946
        %v961 = vpack.c.bf16 %v949, %v948
        %v962 = vpack.c.bf16 %v951, %v950
        %v963 = vpack.c.bf16 %v953, %v952
        %v965 = vsel %vm468, %v892, 0
        %v968 = vsel %vm468, %v893, 0
        %970 = vmatprep.subr.bf16.mxu0 0
        %971 = vmatpush1.bf16.msra.mxu0 %v954
        %972 = vmatprep.subr.bf16.mxu0 0
        %973 = vmatpush1.bf16.msra.mxu0 %v955
        %974 = vmatprep.subr.bf16.mxu0 0
        %975 = vmatpush1.bf16.msra.mxu0 0
        %976 = vmatprep.subr.bf16.mxu0 0
        %977 = vmatpush1.bf16.msra.mxu0 0
        %978 = vmatprep.subr.bf16.mxu0 0
        %979 = vmatpush1.bf16.msra.mxu0 0
        %980 = vmatprep.subr.bf16.mxu0 0
        %981 = vmatpush1.bf16.msra.mxu0 0
        %982 = vmatprep.subr.bf16.mxu0 0
        %983 = vmatpush1.bf16.msra.mxu0 0
        %984 = vmatprep.subr.bf16.mxu0 0
        %985 = vmatpush1.bf16.msra.mxu0 0
        %986 = vmatprep.subr.bf16.mxu0 0
        %987 = vmatpush1.bf16.msra.mxu0 0
        %988 = vmatprep.subr.bf16.mxu0 0
        %989 = vmatpush1.bf16.msra.mxu0 0
        %990 = vmatprep.subr.bf16.mxu0 0
        %991 = vmatpush1.bf16.msra.mxu0 0
        %992 = vmatprep.subr.bf16.mxu0 0
        %993 = vmatpush1.bf16.msra.mxu0 0
        %994 = vmatprep.subr.bf16.mxu0 0
        %995 = vmatpush1.bf16.msra.mxu0 0
        %996 = vmatprep.subr.bf16.mxu0 0
        %997 = vmatpush1.bf16.msra.mxu0 0
        %998 = vmatprep.subr.bf16.mxu0 0
        %999 = vmatpush1.bf16.msra.mxu0 0
        %1000 = vmatprep.subr.bf16.mxu0 0
        %1001 = vmatpush1.bf16.msra.mxu0 0
        %1002 = vmatprep.mubr.bf16.mxu0 0
        %1003 = vmatmul.mubr.bf16.gmra.mrb[0].mxu0 %v965
        %v1004 = vpop.f32.mrb[0].mxu0
        %v1005 = vadd.f32 0.0, %v1004
        %v1006 = vpop.f32.mrb[0].mxu0
        %v1007 = vpop.f32.mrb[0].mxu0
        %v1008 = vadd.f32 0.0, %v1007
        %v1009 = vpop.f32.mrb[0].mxu0
        %1010 = vmatprep.mubr.bf16.mxu0 0
        %1011 = vmatmul.mubr.bf16.gmra.mrb[0].mxu0 %v968
        %v1012 = vpop.f32.mrb[0].mxu0
        %v1013 = vadd.f32 0.0, %v1012
        %v1014 = vpop.f32.mrb[0].mxu0
        %v1015 = vpop.f32.mrb[0].mxu0
        %v1016 = vadd.f32 0.0, %v1015
        %v1017 = vpop.f32.mrb[0].mxu0
        %1018 = vdwg.mxu0
        %1019 = vmatprep.subr.bf16.mxu0 0
        %1020 = vmatpush1.bf16.msra.mxu0 %v904
        %1021 = vmatprep.subr.bf16.mxu0 0
        %1022 = vmatpush1.bf16.msra.mxu0 %v905
        %1023 = vmatprep.subr.bf16.mxu0 0
        %1024 = vmatpush1.bf16.msra.mxu0 0
        %1025 = vmatprep.subr.bf16.mxu0 0
        %1026 = vmatpush1.bf16.msra.mxu0 0
        %1027 = vmatprep.subr.bf16.mxu0 0
        %1028 = vmatpush1.bf16.msra.mxu0 0
        %1029 = vmatprep.subr.bf16.mxu0 0
        %1030 = vmatpush1.bf16.msra.mxu0 0
        %1031 = vmatprep.subr.bf16.mxu0 0
        %1032 = vmatpush1.bf16.msra.mxu0 0
        %1033 = vmatprep.subr.bf16.mxu0 0
        %1034 = vmatpush1.bf16.msra.mxu0 0
        %1035 = vmatprep.subr.bf16.mxu0 0
        %1036 = vmatpush1.bf16.msra.mxu0 0
        %1037 = vmatprep.subr.bf16.mxu0 0
        %1038 = vmatpush1.bf16.msra.mxu0 0
        %1039 = vmatprep.subr.bf16.mxu0 0
        %1040 = vmatpush1.bf16.msra.mxu0 0
        %1041 = vmatprep.subr.bf16.mxu0 0
        %1042 = vmatpush1.bf16.msra.mxu0 0
        %1043 = vmatprep.subr.bf16.mxu0 0
        %1044 = vmatpush1.bf16.msra.mxu0 0
        %1045 = vmatprep.subr.bf16.mxu0 0
        %1046 = vmatpush1.bf16.msra.mxu0 0
        %1047 = vmatprep.subr.bf16.mxu0 0
        %1048 = vmatpush1.bf16.msra.mxu0 0
        %1049 = vmatprep.subr.bf16.mxu0 0
        %1050 = vmatpush1.bf16.msra.mxu0 0
        %1051 = vmatprep.mubr.bf16.mxu0 0
        %1052 = vmatmul.mubr.bf16.gmra.mrb[0].mxu0 %v965
        %v1053 = vpop.f32.mrb[0].mxu0
        %v1054 = vadd.f32 %v1005, %v1053
        %v1055 = vpop.f32.mrb[0].mxu0
        %v1056 = vpop.f32.mrb[0].mxu0
        %v1057 = vadd.f32 %v1008, %v1056
        %v1058 = vpop.f32.mrb[0].mxu0
        %1059 = vmatprep.mubr.bf16.mxu0 0
        %1060 = vmatmul.mubr.bf16.gmra.mrb[0].mxu0 %v968
        %v1061 = vpop.f32.mrb[0].mxu0
        %v1062 = vadd.f32 %v1013, %v1061
        %v1063 = vpop.f32.mrb[0].mxu0
        %v1064 = vpop.f32.mrb[0].mxu0
        %v1065 = vadd.f32 %v1016, %v1064
        %v1066 = vpop.f32.mrb[0].mxu0
        %1067 = vdwg.mxu0
        %v1069 = vsel %vm468, %v902, 0
        %v1072 = vsel %vm468, %v903, 0
        %1074 = vmatprep.subr.bf16.mxu0 0
        %1075 = vmatpush1.bf16.msra.mxu0 %v904
        %1076 = vmatprep.subr.bf16.mxu0 0
        %1077 = vmatpush1.bf16.msra.mxu0 %v905
        %1078 = vmatprep.subr.bf16.mxu0 0
        %1079 = vmatpush1.bf16.msra.mxu0 0
        %1080 = vmatprep.subr.bf16.mxu0 0
        %1081 = vmatpush1.bf16.msra.mxu0 0
        %1082 = vmatprep.subr.bf16.mxu0 0
        %1083 = vmatpush1.bf16.msra.mxu0 0
        %1084 = vmatprep.subr.bf16.mxu0 0
        %1085 = vmatpush1.bf16.msra.mxu0 0
        %1086 = vmatprep.subr.bf16.mxu0 0
        %1087 = vmatpush1.bf16.msra.mxu0 0
        %1088 = vmatprep.subr.bf16.mxu0 0
        %1089 = vmatpush1.bf16.msra.mxu0 0
        %1090 = vmatprep.subr.bf16.mxu0 0
        %1091 = vmatpush1.bf16.msra.mxu0 0
        %1092 = vmatprep.subr.bf16.mxu0 0
        %1093 = vmatpush1.bf16.msra.mxu0 0
        %1094 = vmatprep.subr.bf16.mxu0 0
        %1095 = vmatpush1.bf16.msra.mxu0 0
        %1096 = vmatprep.subr.bf16.mxu0 0
        %1097 = vmatpush1.bf16.msra.mxu0 0
        %1098 = vmatprep.subr.bf16.mxu0 0
        %1099 = vmatpush1.bf16.msra.mxu0 0
        %1100 = vmatprep.subr.bf16.mxu0 0
        %1101 = vmatpush1.bf16.msra.mxu0 0
        %1102 = vmatprep.subr.bf16.mxu0 0
        %1103 = vmatpush1.bf16.msra.mxu0 0
        %1104 = vmatprep.subr.bf16.mxu0 0
        %1105 = vmatpush1.bf16.msra.mxu0 0
        %1106 = vmatprep.mubr.bf16.mxu0 0
        %1107 = vmatmul.mubr.bf16.gmra.mrb[0].mxu0 %v1069
        %v1108 = vpop.f32.mrb[0].mxu0
        %v1109 = vadd.f32 0.0, %v1108
        %v1110 = vpop.f32.mrb[0].mxu0
        %v1111 = vpop.f32.mrb[0].mxu0
        %v1112 = vadd.f32 0.0, %v1111
        %v1113 = vpop.f32.mrb[0].mxu0
        %1114 = vmatprep.mubr.bf16.mxu0 0
        %1115 = vmatmul.mubr.bf16.gmra.mrb[0].mxu0 %v1072
        %v1116 = vpop.f32.mrb[0].mxu0
        %v1117 = vadd.f32 0.0, %v1116
        %v1118 = vpop.f32.mrb[0].mxu0
        %v1119 = vpop.f32.mrb[0].mxu0
        %v1120 = vadd.f32 0.0, %v1119
        %v1121 = vpop.f32.mrb[0].mxu0
        %1122 = vdwg.mxu0
        %v1123 = vadd.f32 %v1054, %v1109
        %v1124 = vadd.f32 %v1057, %v1112
        %v1125 = vadd.f32 %v1062, %v1117
        %v1126 = vadd.f32 %v1065, %v1120
        %1127 = vmatprep.subr.bf16.mxu0 0
        %1128 = vmatpush1.bf16.msra.mxu0 %v956
        %1129 = vmatprep.subr.bf16.mxu0 0
        %1130 = vmatpush1.bf16.msra.mxu0 %v957
        %1131 = vmatprep.subr.bf16.mxu0 0
        %1132 = vmatpush1.bf16.msra.mxu0 0
        %1133 = vmatprep.subr.bf16.mxu0 0
        %1134 = vmatpush1.bf16.msra.mxu0 0
        %1135 = vmatprep.subr.bf16.mxu0 0
        %1136 = vmatpush1.bf16.msra.mxu0 0
        %1137 = vmatprep.subr.bf16.mxu0 0
        %1138 = vmatpush1.bf16.msra.mxu0 0
        %1139 = vmatprep.subr.bf16.mxu0 0
        %1140 = vmatpush1.bf16.msra.mxu0 0
        %1141 = vmatprep.subr.bf16.mxu0 0
        %1142 = vmatpush1.bf16.msra.mxu0 0
        %1143 = vmatprep.subr.bf16.mxu0 0
        %1144 = vmatpush1.bf16.msra.mxu0 0
        %1145 = vmatprep.subr.bf16.mxu0 0
        %1146 = vmatpush1.bf16.msra.mxu0 0
        %1147 = vmatprep.subr.bf16.mxu0 0
        %1148 = vmatpush1.bf16.msra.mxu0 0
        %1149 = vmatprep.subr.bf16.mxu0 0
        %1150 = vmatpush1.bf16.msra.mxu0 0
        %1151 = vmatprep.subr.bf16.mxu0 0
        %1152 = vmatpush1.bf16.msra.mxu0 0
        %1153 = vmatprep.subr.bf16.mxu0 0
        %1154 = vmatpush1.bf16.msra.mxu0 0
        %1155 = vmatprep.subr.bf16.mxu0 0
        %1156 = vmatpush1.bf16.msra.mxu0 0
        %1157 = vmatprep.subr.bf16.mxu0 0
        %1158 = vmatpush1.bf16.msra.mxu0 0
        %1159 = vmatprep.mubr.bf16.mxu0 0
        %1160 = vmatmul.mubr.bf16.gmra.mrb[0].mxu0 %v965
        %v1161 = vpop.f32.mrb[0].mxu0
        %v1162 = vadd.f32 0.0, %v1161
        %v1163 = vpop.f32.mrb[0].mxu0
        %v1164 = vpop.f32.mrb[0].mxu0
        %v1165 = vadd.f32 0.0, %v1164
        %v1166 = vpop.f32.mrb[0].mxu0
        %1167 = vmatprep.mubr.bf16.mxu0 0
        %1168 = vmatmul.mubr.bf16.gmra.mrb[0].mxu0 %v968
        %v1169 = vpop.f32.mrb[0].mxu0
        %v1170 = vadd.f32 0.0, %v1169
        %v1171 = vpop.f32.mrb[0].mxu0
        %v1172 = vpop.f32.mrb[0].mxu0
        %v1173 = vadd.f32 0.0, %v1172
        %v1174 = vpop.f32.mrb[0].mxu0
        %1175 = vdwg.mxu0
        %1176 = vmatprep.subr.bf16.mxu0 0
        %1177 = vmatpush1.bf16.msra.mxu0 %v906
        %1178 = vmatprep.subr.bf16.mxu0 0
        %1179 = vmatpush1.bf16.msra.mxu0 %v907
        %1180 = vmatprep.subr.bf16.mxu0 0
        %1181 = vmatpush1.bf16.msra.mxu0 0
        %1182 = vmatprep.subr.bf16.mxu0 0
        %1183 = vmatpush1.bf16.msra.mxu0 0
        %1184 = vmatprep.subr.bf16.mxu0 0
        %1185 = vmatpush1.bf16.msra.mxu0 0
        %1186 = vmatprep.subr.bf16.mxu0 0
        %1187 = vmatpush1.bf16.msra.mxu0 0
        %1188 = vmatprep.subr.bf16.mxu0 0
        %1189 = vmatpush1.bf16.msra.mxu0 0
        %1190 = vmatprep.subr.bf16.mxu0 0
        %1191 = vmatpush1.bf16.msra.mxu0 0
        %1192 = vmatprep.subr.bf16.mxu0 0
        %1193 = vmatpush1.bf16.msra.mxu0 0
        %1194 = vmatprep.subr.bf16.mxu0 0
        %1195 = vmatpush1.bf16.msra.mxu0 0
        %1196 = vmatprep.subr.bf16.mxu0 0
        %1197 = vmatpush1.bf16.msra.mxu0 0
        %1198 = vmatprep.subr.bf16.mxu0 0
        %1199 = vmatpush1.bf16.msra.mxu0 0
        %1200 = vmatprep.subr.bf16.mxu0 0
        %1201 = vmatpush1.bf16.msra.mxu0 0
        %1202 = vmatprep.subr.bf16.mxu0 0
        %1203 = vmatpush1.bf16.msra.mxu0 0
        %1204 = vmatprep.subr.bf16.mxu0 0
        %1205 = vmatpush1.bf16.msra.mxu0 0
        %1206 = vmatprep.subr.bf16.mxu0 0
        %1207 = vmatpush1.bf16.msra.mxu0 0
        %1208 = vmatprep.mubr.bf16.mxu0 0
        %1209 = vmatmul.mubr.bf16.gmra.mrb[0].mxu0 %v965
        %v1210 = vpop.f32.mrb[0].mxu0
        %v1211 = vadd.f32 %v1162, %v1210
        %v1212 = vpop.f32.mrb[0].mxu0
        %v1213 = vpop.f32.mrb[0].mxu0
        %v1214 = vadd.f32 %v1165, %v1213
        %v1215 = vpop.f32.mrb[0].mxu0
        %1216 = vmatprep.mubr.bf16.mxu0 0
        %1217 = vmatmul.mubr.bf16.gmra.mrb[0].mxu0 %v968
        %v1218 = vpop.f32.mrb[0].mxu0
        %v1219 = vadd.f32 %v1170, %v1218
        %v1220 = vpop.f32.mrb[0].mxu0
        %v1221 = vpop.f32.mrb[0].mxu0
        %v1222 = vadd.f32 %v1173, %v1221
        %v1223 = vpop.f32.mrb[0].mxu0
        %1224 = vdwg.mxu0
        %1225 = vmatprep.subr.bf16.mxu0 0
        %1226 = vmatpush1.bf16.msra.mxu0 %v906
        %1227 = vmatprep.subr.bf16.mxu0 0
        %1228 = vmatpush1.bf16.msra.mxu0 %v907
        %1229 = vmatprep.subr.bf16.mxu0 0
        %1230 = vmatpush1.bf16.msra.mxu0 0
        %1231 = vmatprep.subr.bf16.mxu0 0
        %1232 = vmatpush1.bf16.msra.mxu0 0
        %1233 = vmatprep.subr.bf16.mxu0 0
        %1234 = vmatpush1.bf16.msra.mxu0 0
        %1235 = vmatprep.subr.bf16.mxu0 0
        %1236 = vmatpush1.bf16.msra.mxu0 0
        %1237 = vmatprep.subr.bf16.mxu0 0
        %1238 = vmatpush1.bf16.msra.mxu0 0
        %1239 = vmatprep.subr.bf16.mxu0 0
        %1240 = vmatpush1.bf16.msra.mxu0 0
        %1241 = vmatprep.subr.bf16.mxu0 0
        %1242 = vmatpush1.bf16.msra.mxu0 0
        %1243 = vmatprep.subr.bf16.mxu0 0
        %1244 = vmatpush1.bf16.msra.mxu0 0
        %1245 = vmatprep.subr.bf16.mxu0 0
        %1246 = vmatpush1.bf16.msra.mxu0 0
        %1247 = vmatprep.subr.bf16.mxu0 0
        %1248 = vmatpush1.bf16.msra.mxu0 0
        %1249 = vmatprep.subr.bf16.mxu0 0
        %1250 = vmatpush1.bf16.msra.mxu0 0
        %1251 = vmatprep.subr.bf16.mxu0 0
        %1252 = vmatpush1.bf16.msra.mxu0 0
        %1253 = vmatprep.subr.bf16.mxu0 0
        %1254 = vmatpush1.bf16.msra.mxu0 0
        %1255 = vmatprep.subr.bf16.mxu0 0
        %1256 = vmatpush1.bf16.msra.mxu0 0
        %1257 = vmatprep.mubr.bf16.mxu0 0
        %1258 = vmatmul.mubr.bf16.gmra.mrb[0].mxu0 %v1069
        %v1259 = vpop.f32.mrb[0].mxu0
        %v1260 = vadd.f32 0.0, %v1259
        %v1261 = vpop.f32.mrb[0].mxu0
        %v1262 = vpop.f32.mrb[0].mxu0
        %v1263 = vadd.f32 0.0, %v1262
        %v1264 = vpop.f32.mrb[0].mxu0
        %1265 = vmatprep.mubr.bf16.mxu0 0
        %1266 = vmatmul.mubr.bf16.gmra.mrb[0].mxu0 %v1072
        %v1267 = vpop.f32.mrb[0].mxu0
        %v1268 = vadd.f32 0.0, %v1267
        %v1269 = vpop.f32.mrb[0].mxu0
        %v1270 = vpop.f32.mrb[0].mxu0
        %v1271 = vadd.f32 0.0, %v1270
        %v1272 = vpop.f32.mrb[0].mxu0
        %1273 = vdwg.mxu0
        %v1274 = vadd.f32 %v1211, %v1260
        %v1275 = vadd.f32 %v1214, %v1263
        %v1276 = vadd.f32 %v1219, %v1268
        %v1277 = vadd.f32 %v1222, %v1271
        %1278 = vmatprep.subr.bf16.mxu0 0
        %1279 = vmatpush1.bf16.msra.mxu0 %v958
        %1280 = vmatprep.subr.bf16.mxu0 0
        %1281 = vmatpush1.bf16.msra.mxu0 %v959
        %1282 = vmatprep.subr.bf16.mxu0 0
        %1283 = vmatpush1.bf16.msra.mxu0 0
        %1284 = vmatprep.subr.bf16.mxu0 0
        %1285 = vmatpush1.bf16.msra.mxu0 0
        %1286 = vmatprep.subr.bf16.mxu0 0
        %1287 = vmatpush1.bf16.msra.mxu0 0
        %1288 = vmatprep.subr.bf16.mxu0 0
        %1289 = vmatpush1.bf16.msra.mxu0 0
        %1290 = vmatprep.subr.bf16.mxu0 0
        %1291 = vmatpush1.bf16.msra.mxu0 0
        %1292 = vmatprep.subr.bf16.mxu0 0
        %1293 = vmatpush1.bf16.msra.mxu0 0
        %1294 = vmatprep.subr.bf16.mxu0 0
        %1295 = vmatpush1.bf16.msra.mxu0 0
        %1296 = vmatprep.subr.bf16.mxu0 0
        %1297 = vmatpush1.bf16.msra.mxu0 0
        %1298 = vmatprep.subr.bf16.mxu0 0
        %1299 = vmatpush1.bf16.msra.mxu0 0
        %1300 = vmatprep.subr.bf16.mxu0 0
        %1301 = vmatpush1.bf16.msra.mxu0 0
        %1302 = vmatprep.subr.bf16.mxu0 0
        %1303 = vmatpush1.bf16.msra.mxu0 0
        %1304 = vmatprep.subr.bf16.mxu0 0
        %1305 = vmatpush1.bf16.msra.mxu0 0
        %1306 = vmatprep.subr.bf16.mxu0 0
        %1307 = vmatpush1.bf16.msra.mxu0 0
        %1308 = vmatprep.subr.bf16.mxu0 0
        %1309 = vmatpush1.bf16.msra.mxu0 0
        %1310 = vmatprep.mubr.bf16.mxu0 0
        %1311 = vmatmul.mubr.bf16.gmra.mrb[0].mxu0 %v965
        %v1312 = vpop.f32.mrb[0].mxu0
        %v1313 = vadd.f32 0.0, %v1312
        %v1314 = vpop.f32.mrb[0].mxu0
        %v1315 = vpop.f32.mrb[0].mxu0
        %v1316 = vadd.f32 0.0, %v1315
        %v1317 = vpop.f32.mrb[0].mxu0
        %1318 = vmatprep.mubr.bf16.mxu0 0
        %1319 = vmatmul.mubr.bf16.gmra.mrb[0].mxu0 %v968
        %v1320 = vpop.f32.mrb[0].mxu0
        %v1321 = vadd.f32 0.0, %v1320
        %v1322 = vpop.f32.mrb[0].mxu0
        %v1323 = vpop.f32.mrb[0].mxu0
        %v1324 = vadd.f32 0.0, %v1323
        %v1325 = vpop.f32.mrb[0].mxu0
        %1326 = vdwg.mxu0
        %1327 = vmatprep.subr.bf16.mxu0 0
        %1328 = vmatpush1.bf16.msra.mxu0 %v908
        %1329 = vmatprep.subr.bf16.mxu0 0
        %1330 = vmatpush1.bf16.msra.mxu0 %v909
        %1331 = vmatprep.subr.bf16.mxu0 0
        %1332 = vmatpush1.bf16.msra.mxu0 0
        %1333 = vmatprep.subr.bf16.mxu0 0
        %1334 = vmatpush1.bf16.msra.mxu0 0
        %1335 = vmatprep.subr.bf16.mxu0 0
        %1336 = vmatpush1.bf16.msra.mxu0 0
        %1337 = vmatprep.subr.bf16.mxu0 0
        %1338 = vmatpush1.bf16.msra.mxu0 0
        %1339 = vmatprep.subr.bf16.mxu0 0
        %1340 = vmatpush1.bf16.msra.mxu0 0
        %1341 = vmatprep.subr.bf16.mxu0 0
        %1342 = vmatpush1.bf16.msra.mxu0 0
        %1343 = vmatprep.subr.bf16.mxu0 0
        %1344 = vmatpush1.bf16.msra.mxu0 0
        %1345 = vmatprep.subr.bf16.mxu0 0
        %1346 = vmatpush1.bf16.msra.mxu0 0
        %1347 = vmatprep.subr.bf16.mxu0 0
        %1348 = vmatpush1.bf16.msra.mxu0 0
        %1349 = vmatprep.subr.bf16.mxu0 0
        %1350 = vmatpush1.bf16.msra.mxu0 0
        %1351 = vmatprep.subr.bf16.mxu0 0
        %1352 = vmatpush1.bf16.msra.mxu0 0
        %1353 = vmatprep.subr.bf16.mxu0 0
        %1354 = vmatpush1.bf16.msra.mxu0 0
        %1355 = vmatprep.subr.bf16.mxu0 0
        %1356 = vmatpush1.bf16.msra.mxu0 0
        %1357 = vmatprep.subr.bf16.mxu0 0
        %1358 = vmatpush1.bf16.msra.mxu0 0
        %1359 = vmatprep.mubr.bf16.mxu0 0
        %1360 = vmatmul.mubr.bf16.gmra.mrb[0].mxu0 %v965
        %v1361 = vpop.f32.mrb[0].mxu0
        %v1362 = vadd.f32 %v1313, %v1361
        %v1363 = vpop.f32.mrb[0].mxu0
        %v1364 = vpop.f32.mrb[0].mxu0
        %v1365 = vadd.f32 %v1316, %v1364
        %v1366 = vpop.f32.mrb[0].mxu0
        %1367 = vmatprep.mubr.bf16.mxu0 0
        %1368 = vmatmul.mubr.bf16.gmra.mrb[0].mxu0 %v968
        %v1369 = vpop.f32.mrb[0].mxu0
        %v1370 = vadd.f32 %v1321, %v1369
        %v1371 = vpop.f32.mrb[0].mxu0
        %v1372 = vpop.f32.mrb[0].mxu0
        %v1373 = vadd.f32 %v1324, %v1372
        %v1374 = vpop.f32.mrb[0].mxu0
        %1375 = vdwg.mxu0
        %1376 = vmatprep.subr.bf16.mxu0 0
        %1377 = vmatpush1.bf16.msra.mxu0 %v908
        %1378 = vmatprep.subr.bf16.mxu0 0
        %1379 = vmatpush1.bf16.msra.mxu0 %v909
        %1380 = vmatprep.subr.bf16.mxu0 0
        %1381 = vmatpush1.bf16.msra.mxu0 0
        %1382 = vmatprep.subr.bf16.mxu0 0
        %1383 = vmatpush1.bf16.msra.mxu0 0
        %1384 = vmatprep.subr.bf16.mxu0 0
        %1385 = vmatpush1.bf16.msra.mxu0 0
        %1386 = vmatprep.subr.bf16.mxu0 0
        %1387 = vmatpush1.bf16.msra.mxu0 0
        %1388 = vmatprep.subr.bf16.mxu0 0
        %1389 = vmatpush1.bf16.msra.mxu0 0
        %1390 = vmatprep.subr.bf16.mxu0 0
        %1391 = vmatpush1.bf16.msra.mxu0 0
        %1392 = vmatprep.subr.bf16.mxu0 0
        %1393 = vmatpush1.bf16.msra.mxu0 0
        %1394 = vmatprep.subr.bf16.mxu0 0
        %1395 = vmatpush1.bf16.msra.mxu0 0
        %1396 = vmatprep.subr.bf16.mxu0 0
        %1397 = vmatpush1.bf16.msra.mxu0 0
        %1398 = vmatprep.subr.bf16.mxu0 0
        %1399 = vmatpush1.bf16.msra.mxu0 0
        %1400 = vmatprep.subr.bf16.mxu0 0
        %1401 = vmatpush1.bf16.msra.mxu0 0
        %1402 = vmatprep.subr.bf16.mxu0 0
        %1403 = vmatpush1.bf16.msra.mxu0 0
        %1404 = vmatprep.subr.bf16.mxu0 0
        %1405 = vmatpush1.bf16.msra.mxu0 0
        %1406 = vmatprep.subr.bf16.mxu0 0
        %1407 = vmatpush1.bf16.msra.mxu0 0
        %1408 = vmatprep.mubr.bf16.mxu0 0
        %1409 = vmatmul.mubr.bf16.gmra.mrb[0].mxu0 %v1069
        %v1410 = vpop.f32.mrb[0].mxu0
        %v1411 = vadd.f32 0.0, %v1410
        %v1412 = vpop.f32.mrb[0].mxu0
        %v1413 = vpop.f32.mrb[0].mxu0
        %v1414 = vadd.f32 0.0, %v1413
        %v1415 = vpop.f32.mrb[0].mxu0
        %1416 = vmatprep.mubr.bf16.mxu0 0
        %1417 = vmatmul.mubr.bf16.gmra.mrb[0].mxu0 %v1072
        %v1418 = vpop.f32.mrb[0].mxu0
        %v1419 = vadd.f32 0.0, %v1418
        %v1420 = vpop.f32.mrb[0].mxu0
        %v1421 = vpop.f32.mrb[0].mxu0
        %v1422 = vadd.f32 0.0, %v1421
        %v1423 = vpop.f32.mrb[0].mxu0
        %1424 = vdwg.mxu0
        %v1425 = vadd.f32 %v1362, %v1411
        %v1426 = vadd.f32 %v1365, %v1414
        %v1427 = vadd.f32 %v1370, %v1419
        %v1428 = vadd.f32 %v1373, %v1422
        %1429 = vmatprep.subr.bf16.mxu0 0
        %1430 = vmatpush1.bf16.msra.mxu0 %v960
        %1431 = vmatprep.subr.bf16.mxu0 0
        %1432 = vmatpush1.bf16.msra.mxu0 %v961
        %1433 = vmatprep.subr.bf16.mxu0 0
        %1434 = vmatpush1.bf16.msra.mxu0 0
        %1435 = vmatprep.subr.bf16.mxu0 0
        %1436 = vmatpush1.bf16.msra.mxu0 0
        %1437 = vmatprep.subr.bf16.mxu0 0
        %1438 = vmatpush1.bf16.msra.mxu0 0
        %1439 = vmatprep.subr.bf16.mxu0 0
        %1440 = vmatpush1.bf16.msra.mxu0 0
        %1441 = vmatprep.subr.bf16.mxu0 0
        %1442 = vmatpush1.bf16.msra.mxu0 0
        %1443 = vmatprep.subr.bf16.mxu0 0
        %1444 = vmatpush1.bf16.msra.mxu0 0
        %1445 = vmatprep.subr.bf16.mxu0 0
        %1446 = vmatpush1.bf16.msra.mxu0 0
        %1447 = vmatprep.subr.bf16.mxu0 0
        %1448 = vmatpush1.bf16.msra.mxu0 0
        %1449 = vmatprep.subr.bf16.mxu0 0
        %1450 = vmatpush1.bf16.msra.mxu0 0
        %1451 = vmatprep.subr.bf16.mxu0 0
        %1452 = vmatpush1.bf16.msra.mxu0 0
        %1453 = vmatprep.subr.bf16.mxu0 0
        %1454 = vmatpush1.bf16.msra.mxu0 0
        %1455 = vmatprep.subr.bf16.mxu0 0
        %1456 = vmatpush1.bf16.msra.mxu0 0
        %1457 = vmatprep.subr.bf16.mxu0 0
        %1458 = vmatpush1.bf16.msra.mxu0 0
        %1459 = vmatprep.subr.bf16.mxu0 0
        %1460 = vmatpush1.bf16.msra.mxu0 0
        %1461 = vmatprep.mubr.bf16.mxu0 0
        %1462 = vmatmul.mubr.bf16.gmra.mrb[0].mxu0 %v965
        %v1463 = vpop.f32.mrb[0].mxu0
        %v1464 = vadd.f32 0.0, %v1463
        %v1465 = vpop.f32.mrb[0].mxu0
        %v1466 = vpop.f32.mrb[0].mxu0
        %v1467 = vadd.f32 0.0, %v1466
        %v1468 = vpop.f32.mrb[0].mxu0
        %1469 = vmatprep.mubr.bf16.mxu0 0
        %1470 = vmatmul.mubr.bf16.gmra.mrb[0].mxu0 %v968
        %v1471 = vpop.f32.mrb[0].mxu0
        %v1472 = vadd.f32 0.0, %v1471
        %v1473 = vpop.f32.mrb[0].mxu0
        %v1474 = vpop.f32.mrb[0].mxu0
        %v1475 = vadd.f32 0.0, %v1474
        %v1476 = vpop.f32.mrb[0].mxu0
        %1477 = vdwg.mxu0
        %1478 = vmatprep.subr.bf16.mxu0 0
        %1479 = vmatpush1.bf16.msra.mxu0 %v910
        %1480 = vmatprep.subr.bf16.mxu0 0
        %1481 = vmatpush1.bf16.msra.mxu0 %v911
        %1482 = vmatprep.subr.bf16.mxu0 0
        %1483 = vmatpush1.bf16.msra.mxu0 0
        %1484 = vmatprep.subr.bf16.mxu0 0
        %1485 = vmatpush1.bf16.msra.mxu0 0
        %1486 = vmatprep.subr.bf16.mxu0 0
        %1487 = vmatpush1.bf16.msra.mxu0 0
        %1488 = vmatprep.subr.bf16.mxu0 0
        %1489 = vmatpush1.bf16.msra.mxu0 0
        %1490 = vmatprep.subr.bf16.mxu0 0
        %1491 = vmatpush1.bf16.msra.mxu0 0
        %1492 = vmatprep.subr.bf16.mxu0 0
        %1493 = vmatpush1.bf16.msra.mxu0 0
        %1494 = vmatprep.subr.bf16.mxu0 0
        %1495 = vmatpush1.bf16.msra.mxu0 0
        %1496 = vmatprep.subr.bf16.mxu0 0
        %1497 = vmatpush1.bf16.msra.mxu0 0
        %1498 = vmatprep.subr.bf16.mxu0 0
        %1499 = vmatpush1.bf16.msra.mxu0 0
        %1500 = vmatprep.subr.bf16.mxu0 0
        %1501 = vmatpush1.bf16.msra.mxu0 0
        %1502 = vmatprep.subr.bf16.mxu0 0
        %1503 = vmatpush1.bf16.msra.mxu0 0
        %1504 = vmatprep.subr.bf16.mxu0 0
        %1505 = vmatpush1.bf16.msra.mxu0 0
        %1506 = vmatprep.subr.bf16.mxu0 0
        %1507 = vmatpush1.bf16.msra.mxu0 0
        %1508 = vmatprep.subr.bf16.mxu0 0
        %1509 = vmatpush1.bf16.msra.mxu0 0
        %1510 = vmatprep.mubr.bf16.mxu0 0
        %1511 = vmatmul.mubr.bf16.gmra.mrb[0].mxu0 %v965
        %v1512 = vpop.f32.mrb[0].mxu0
        %v1513 = vadd.f32 %v1464, %v1512
        %v1514 = vpop.f32.mrb[0].mxu0
        %v1515 = vpop.f32.mrb[0].mxu0
        %v1516 = vadd.f32 %v1467, %v1515
        %v1517 = vpop.f32.mrb[0].mxu0
        %1518 = vmatprep.mubr.bf16.mxu0 0
        %1519 = vmatmul.mubr.bf16.gmra.mrb[0].mxu0 %v968
        %v1520 = vpop.f32.mrb[0].mxu0
        %v1521 = vadd.f32 %v1472, %v1520
        %v1522 = vpop.f32.mrb[0].mxu0
        %v1523 = vpop.f32.mrb[0].mxu0
        %v1524 = vadd.f32 %v1475, %v1523
        %v1525 = vpop.f32.mrb[0].mxu0
        %1526 = vdwg.mxu0
        %1527 = vmatprep.subr.bf16.mxu0 0
        %1528 = vmatpush1.bf16.msra.mxu0 %v910
        %1529 = vmatprep.subr.bf16.mxu0 0
        %1530 = vmatpush1.bf16.msra.mxu0 %v911
        %1531 = vmatprep.subr.bf16.mxu0 0
        %1532 = vmatpush1.bf16.msra.mxu0 0
        %1533 = vmatprep.subr.bf16.mxu0 0
        %1534 = vmatpush1.bf16.msra.mxu0 0
        %1535 = vmatprep.subr.bf16.mxu0 0
        %1536 = vmatpush1.bf16.msra.mxu0 0
        %1537 = vmatprep.subr.bf16.mxu0 0
        %1538 = vmatpush1.bf16.msra.mxu0 0
        %1539 = vmatprep.subr.bf16.mxu0 0
        %1540 = vmatpush1.bf16.msra.mxu0 0
        %1541 = vmatprep.subr.bf16.mxu0 0
        %1542 = vmatpush1.bf16.msra.mxu0 0
        %1543 = vmatprep.subr.bf16.mxu0 0
        %1544 = vmatpush1.bf16.msra.mxu0 0
        %1545 = vmatprep.subr.bf16.mxu0 0
        %1546 = vmatpush1.bf16.msra.mxu0 0
        %1547 = vmatprep.subr.bf16.mxu0 0
        %1548 = vmatpush1.bf16.msra.mxu0 0
        %1549 = vmatprep.subr.bf16.mxu0 0
        %1550 = vmatpush1.bf16.msra.mxu0 0
        %1551 = vmatprep.subr.bf16.mxu0 0
        %1552 = vmatpush1.bf16.msra.mxu0 0
        %1553 = vmatprep.subr.bf16.mxu0 0
        %1554 = vmatpush1.bf16.msra.mxu0 0
        %1555 = vmatprep.subr.bf16.mxu0 0
        %1556 = vmatpush1.bf16.msra.mxu0 0
        %1557 = vmatprep.subr.bf16.mxu0 0
        %1558 = vmatpush1.bf16.msra.mxu0 0
        %1559 = vmatprep.mubr.bf16.mxu0 0
        %1560 = vmatmul.mubr.bf16.gmra.mrb[0].mxu0 %v1069
        %v1561 = vpop.f32.mrb[0].mxu0
        %v1562 = vadd.f32 0.0, %v1561
        %v1563 = vpop.f32.mrb[0].mxu0
        %v1564 = vpop.f32.mrb[0].mxu0
        %v1565 = vadd.f32 0.0, %v1564
        %v1566 = vpop.f32.mrb[0].mxu0
        %1567 = vmatprep.mubr.bf16.mxu0 0
        %1568 = vmatmul.mubr.bf16.gmra.mrb[0].mxu0 %v1072
        %v1569 = vpop.f32.mrb[0].mxu0
        %v1570 = vadd.f32 0.0, %v1569
        %v1571 = vpop.f32.mrb[0].mxu0
        %v1572 = vpop.f32.mrb[0].mxu0
        %v1573 = vadd.f32 0.0, %v1572
        %v1574 = vpop.f32.mrb[0].mxu0
        %1575 = vdwg.mxu0
        %v1576 = vadd.f32 %v1513, %v1562
        %v1577 = vadd.f32 %v1516, %v1565
        %v1578 = vadd.f32 %v1521, %v1570
        %v1579 = vadd.f32 %v1524, %v1573
        %1580 = vmatprep.subr.bf16.mxu0 0
        %1581 = vmatpush1.bf16.msra.mxu0 %v962
        %1582 = vmatprep.subr.bf16.mxu0 0
        %1583 = vmatpush1.bf16.msra.mxu0 %v963
        %1584 = vmatprep.subr.bf16.mxu0 0
        %1585 = vmatpush1.bf16.msra.mxu0 0
        %1586 = vmatprep.subr.bf16.mxu0 0
        %1587 = vmatpush1.bf16.msra.mxu0 0
        %1588 = vmatprep.subr.bf16.mxu0 0
        %1589 = vmatpush1.bf16.msra.mxu0 0
        %1590 = vmatprep.subr.bf16.mxu0 0
        %1591 = vmatpush1.bf16.msra.mxu0 0
        %1592 = vmatprep.subr.bf16.mxu0 0
        %1593 = vmatpush1.bf16.msra.mxu0 0
        %1594 = vmatprep.subr.bf16.mxu0 0
        %1595 = vmatpush1.bf16.msra.mxu0 0
        %1596 = vmatprep.subr.bf16.mxu0 0
        %1597 = vmatpush1.bf16.msra.mxu0 0
        %1598 = vmatprep.subr.bf16.mxu0 0
        %1599 = vmatpush1.bf16.msra.mxu0 0
        %1600 = vmatprep.subr.bf16.mxu0 0
        %1601 = vmatpush1.bf16.msra.mxu0 0
        %1602 = vmatprep.subr.bf16.mxu0 0
        %1603 = vmatpush1.bf16.msra.mxu0 0
        %1604 = vmatprep.subr.bf16.mxu0 0
        %1605 = vmatpush1.bf16.msra.mxu0 0
        %1606 = vmatprep.subr.bf16.mxu0 0
        %1607 = vmatpush1.bf16.msra.mxu0 0
        %1608 = vmatprep.subr.bf16.mxu0 0
        %1609 = vmatpush1.bf16.msra.mxu0 0
        %1610 = vmatprep.subr.bf16.mxu0 0
        %1611 = vmatpush1.bf16.msra.mxu0 0
        %1612 = vmatprep.mubr.bf16.mxu0 0
        %1613 = vmatmul.mubr.bf16.gmra.mrb[0].mxu0 %v965
        %v1614 = vpop.f32.mrb[0].mxu0
        %v1615 = vadd.f32 0.0, %v1614
        %v1616 = vpop.f32.mrb[0].mxu0
        %v1617 = vpop.f32.mrb[0].mxu0
        %v1618 = vadd.f32 0.0, %v1617
        %v1619 = vpop.f32.mrb[0].mxu0
        %1620 = vmatprep.mubr.bf16.mxu0 0
        %1621 = vmatmul.mubr.bf16.gmra.mrb[0].mxu0 %v968
        %v1622 = vpop.f32.mrb[0].mxu0
        %v1623 = vadd.f32 0.0, %v1622
        %v1624 = vpop.f32.mrb[0].mxu0
        %v1625 = vpop.f32.mrb[0].mxu0
        %v1626 = vadd.f32 0.0, %v1625
        %v1627 = vpop.f32.mrb[0].mxu0
        %1628 = vdwg.mxu0
        %1629 = vmatprep.subr.bf16.mxu0 0
        %1630 = vmatpush1.bf16.msra.mxu0 %v912
        %1631 = vmatprep.subr.bf16.mxu0 0
        %1632 = vmatpush1.bf16.msra.mxu0 %v913
        %1633 = vmatprep.subr.bf16.mxu0 0
        %1634 = vmatpush1.bf16.msra.mxu0 0
        %1635 = vmatprep.subr.bf16.mxu0 0
        %1636 = vmatpush1.bf16.msra.mxu0 0
        %1637 = vmatprep.subr.bf16.mxu0 0
        %1638 = vmatpush1.bf16.msra.mxu0 0
        %1639 = vmatprep.subr.bf16.mxu0 0
        %1640 = vmatpush1.bf16.msra.mxu0 0
        %1641 = vmatprep.subr.bf16.mxu0 0
        %1642 = vmatpush1.bf16.msra.mxu0 0
        %1643 = vmatprep.subr.bf16.mxu0 0
        %1644 = vmatpush1.bf16.msra.mxu0 0
        %1645 = vmatprep.subr.bf16.mxu0 0
        %1646 = vmatpush1.bf16.msra.mxu0 0
        %1647 = vmatprep.subr.bf16.mxu0 0
        %1648 = vmatpush1.bf16.msra.mxu0 0
        %1649 = vmatprep.subr.bf16.mxu0 0
        %1650 = vmatpush1.bf16.msra.mxu0 0
        %1651 = vmatprep.subr.bf16.mxu0 0
        %1652 = vmatpush1.bf16.msra.mxu0 0
        %1653 = vmatprep.subr.bf16.mxu0 0
        %1654 = vmatpush1.bf16.msra.mxu0 0
        %1655 = vmatprep.subr.bf16.mxu0 0
        %1656 = vmatpush1.bf16.msra.mxu0 0
        %1657 = vmatprep.subr.bf16.mxu0 0
        %1658 = vmatpush1.bf16.msra.mxu0 0
        %1659 = vmatprep.subr.bf16.mxu0 0
        %1660 = vmatpush1.bf16.msra.mxu0 0
        %1661 = vmatprep.mubr.bf16.mxu0 0
        %1662 = vmatmul.mubr.bf16.gmra.mrb[0].mxu0 %v965
        %v1663 = vpop.f32.mrb[0].mxu0
        %v1664 = vadd.f32 %v1615, %v1663
        %v1665 = vpop.f32.mrb[0].mxu0
        %v1666 = vpop.f32.mrb[0].mxu0
        %v1667 = vadd.f32 %v1618, %v1666
        %v1668 = vpop.f32.mrb[0].mxu0
        %1669 = vmatprep.mubr.bf16.mxu0 0
        %1670 = vmatmul.mubr.bf16.gmra.mrb[0].mxu0 %v968
        %v1671 = vpop.f32.mrb[0].mxu0
        %v1672 = vadd.f32 %v1623, %v1671
        %v1673 = vpop.f32.mrb[0].mxu0
        %v1674 = vpop.f32.mrb[0].mxu0
        %v1675 = vadd.f32 %v1626, %v1674
        %v1676 = vpop.f32.mrb[0].mxu0
        %1677 = vdwg.mxu0
        %1678 = vmatprep.subr.bf16.mxu0 0
        %1679 = vmatpush1.bf16.msra.mxu0 %v912
        %1680 = vmatprep.subr.bf16.mxu0 0
        %1681 = vmatpush1.bf16.msra.mxu0 %v913
        %1682 = vmatprep.subr.bf16.mxu0 0
        %1683 = vmatpush1.bf16.msra.mxu0 0
        %1684 = vmatprep.subr.bf16.mxu0 0
        %1685 = vmatpush1.bf16.msra.mxu0 0
        %1686 = vmatprep.subr.bf16.mxu0 0
        %1687 = vmatpush1.bf16.msra.mxu0 0
        %1688 = vmatprep.subr.bf16.mxu0 0
        %1689 = vmatpush1.bf16.msra.mxu0 0
        %1690 = vmatprep.subr.bf16.mxu0 0
        %1691 = vmatpush1.bf16.msra.mxu0 0
        %1692 = vmatprep.subr.bf16.mxu0 0
        %1693 = vmatpush1.bf16.msra.mxu0 0
        %1694 = vmatprep.subr.bf16.mxu0 0
        %1695 = vmatpush1.bf16.msra.mxu0 0
        %1696 = vmatprep.subr.bf16.mxu0 0
        %1697 = vmatpush1.bf16.msra.mxu0 0
        %1698 = vmatprep.subr.bf16.mxu0 0
        %1699 = vmatpush1.bf16.msra.mxu0 0
        %1700 = vmatprep.subr.bf16.mxu0 0
        %1701 = vmatpush1.bf16.msra.mxu0 0
        %1702 = vmatprep.subr.bf16.mxu0 0
        %1703 = vmatpush1.bf16.msra.mxu0 0
        %1704 = vmatprep.subr.bf16.mxu0 0
        %1705 = vmatpush1.bf16.msra.mxu0 0
        %1706 = vmatprep.subr.bf16.mxu0 0
        %1707 = vmatpush1.bf16.msra.mxu0 0
        %1708 = vmatprep.subr.bf16.mxu0 0
        %1709 = vmatpush1.bf16.msra.mxu0 0
        %1710 = vmatprep.mubr.bf16.mxu0 0
        %1711 = vmatmul.mubr.bf16.gmra.mrb[0].mxu0 %v1069
        %v1712 = vpop.f32.mrb[0].mxu0
        %v1713 = vadd.f32 0.0, %v1712
        %v1714 = vpop.f32.mrb[0].mxu0
        %v1715 = vpop.f32.mrb[0].mxu0
        %v1716 = vadd.f32 0.0, %v1715
        %v1717 = vpop.f32.mrb[0].mxu0
        %1718 = vmatprep.mubr.bf16.mxu0 0
        %1719 = vmatmul.mubr.bf16.gmra.mrb[0].mxu0 %v1072
        %v1720 = vpop.f32.mrb[0].mxu0
        %v1721 = vadd.f32 0.0, %v1720
        %v1722 = vpop.f32.mrb[0].mxu0
        %v1723 = vpop.f32.mrb[0].mxu0
        %v1724 = vadd.f32 0.0, %v1723
        %v1725 = vpop.f32.mrb[0].mxu0
        %1726 = vdwg.mxu0
        %v1727 = vadd.f32 %v1664, %v1713
        %v1728 = vadd.f32 %v1667, %v1716
        %v1729 = vadd.f32 %v1672, %v1721
        %v1730 = vadd.f32 %v1675, %v1724
        %v1731 = vmul.f32 %v1123, %v1274
        %v1732 = vmul.f32 %v1124, %v1275
        %v1733 = vmul.f32 %v1125, %v1276
        %v1734 = vmul.f32 %v1126, %v1277
        %v1735 = vmul.f32 %v1123, %v1123
        %v1736 = vmul.f32 %v1124, %v1124
        %v1737 = vmul.f32 %v1125, %v1125
        %v1738 = vmul.f32 %v1126, %v1126
        %v1739 = vmul.f32 %v1274, %v1274
        %v1740 = vmul.f32 %v1275, %v1275
        %v1741 = vmul.f32 %v1276, %v1276
        %v1742 = vmul.f32 %v1277, %v1277
        %v1743 = vadd.f32 %v1735, %v1739
        %v1744 = vadd.f32 %v1736, %v1740
        %v1745 = vadd.f32 %v1737, %v1741
        %v1746 = vadd.f32 %v1738, %v1742
        %v1747 = vmul.f32 %v1731, 2.0
        %v1748 = vmul.f32 %v1732, 2.0
        %v1749 = vmul.f32 %v1733, 2.0
        %v1750 = vmul.f32 %v1734, 2.0
        %v1751 = vadd.f32 %v1747, 0.0001
        %v1752 = vadd.f32 %v1748, 0.0001
        %v1753 = vadd.f32 %v1749, 0.0001
        %v1754 = vadd.f32 %v1750, 0.0001
        %v1755 = vsub.f32 %v1727, %v1731
        %v1756 = vsub.f32 %v1728, %v1732
        %v1757 = vsub.f32 %v1729, %v1733
        %v1758 = vsub.f32 %v1730, %v1734
        %v1759 = vmul.f32 %v1755, 2.0
        %v1760 = vmul.f32 %v1756, 2.0
        %v1761 = vmul.f32 %v1757, 2.0
        %v1762 = vmul.f32 %v1758, 2.0
        %v1763 = vadd.f32 %v1759, 0.0009
        %v1764 = vadd.f32 %v1760, 0.0009
        %v1765 = vadd.f32 %v1761, 0.0009
        %v1766 = vadd.f32 %v1762, 0.0009
        %v1767 = vmul.f32 %v1751, %v1763
        %v1768 = vmul.f32 %v1752, %v1764
        %v1769 = vmul.f32 %v1753, %v1765
        %v1770 = vmul.f32 %v1754, %v1766
        %v1771 = vadd.f32 %v1743, 0.0001
        %v1772 = vadd.f32 %v1744, 0.0001
        %v1773 = vadd.f32 %v1745, 0.0001
        %v1774 = vadd.f32 %v1746, 0.0001
        %v1775 = vadd.f32 %v1425, %v1576
        %v1776 = vadd.f32 %v1426, %v1577
        %v1777 = vadd.f32 %v1427, %v1578
        %v1778 = vadd.f32 %v1428, %v1579
        %v1779 = vsub.f32 %v1775, %v1743
        %v1780 = vsub.f32 %v1776, %v1744
        %v1781 = vsub.f32 %v1777, %v1745
        %v1782 = vsub.f32 %v1778, %v1746
        %v1783 = vadd.f32 %v1779, 0.0009
        %v1784 = vadd.f32 %v1780, 0.0009
        %v1785 = vadd.f32 %v1781, 0.0009
        %v1786 = vadd.f32 %v1782, 0.0009
        %v1787 = vmul.f32 %v1771, %v1783
        %v1788 = vmul.f32 %v1772, %v1784
        %v1789 = vmul.f32 %v1773, %v1785
        %v1790 = vmul.f32 %v1774, %v1786
        %v1791 = vrcp.pop %v1787
        %v1792 = vmul.f32 %v1767, %v1791
        %v1793 = vrcp.pop %v1788
        %v1794 = vmul.f32 %v1768, %v1793
        %v1795 = vrcp.pop %v1789
        %v1796 = vmul.f32 %v1769, %v1795
        %v1797 = vrcp.pop %v1790
        %v1798 = vmul.f32 %v1770, %v1797
        %v1799 = vsel %vm468, %v376, 0.0
        %v1800 = vsel %vm468, %v377, 0.0
        %v1801 = vadd.f32 %v1799, %v1800
        %v1802 = vsel %vm468, %v378, 0.0
        %v1803 = vadd.f32 %v1801, %v1802
        %v1804 = vsel %vm468, %v379, 0.0
        %v1805 = vadd.f32 %v1803, %v1804
        %1806 = vadd.xlane.f32.xlu0 %v1805
        %v1807 = vpop.xlane.xlu0 %1806
        %v1808 = vrot.slane %v1807, 4
        %v1809 = vadd.f32 %v1807, %v1808
        %v1810 = vrot.slane %v1809, 2
        %v1811 = vadd.f32 %v1809, %v1810
        %v1812 = vrot.slane %v1811, 1
        %v1813 = vadd.f32 %v1811, %v1812
        %s1814 = vtos %v1813
        %v1815 = vlaneseq
        %v1816 = vshrl.u32 %v1815, 7
        %v1817 = vlaneseq
        %v1818 = vand.u32 %v1817, 127
        %vm1819 = vcmp.eq.s32.totalorder %v1816, 0
        %vm1820 = vcmp.eq.s32.totalorder %v1818, 0
        %vm1821 = vmand %vm1819, %vm1820
        %v1822 = vstv %s1814
        %v1823 = vsel %vm1821, %v1822, 0.0
        %1824 = vst [vmem:[%s315] sm:$0xff] %v1823
        %v1825 = vsel %vm468, %v1792, 0.0
        %v1826 = vsel %vm468, %v1794, 0.0
        %v1827 = vadd.f32 %v1825, %v1826
        %v1828 = vsel %vm468, %v1796, 0.0
        %v1829 = vadd.f32 %v1827, %v1828
        %v1830 = vsel %vm468, %v1798, 0.0
        %v1831 = vadd.f32 %v1829, %v1830
        %1832 = vadd.xlane.f32.xlu0 %v1831
        %v1833 = vpop.xlane.xlu0 %1832
        %v1834 = vrot.slane %v1833, 4
        %v1835 = vadd.f32 %v1833, %v1834
        %v1836 = vrot.slane %v1835, 2
        %v1837 = vadd.f32 %v1835, %v1836
        %v1838 = vrot.slane %v1837, 1
        %v1839 = vadd.f32 %v1837, %v1838
        %s1840 = vtos %v1839
        %v1841 = vstv %s1840
        %v1842 = vsel %vm1821, %v1841, 0.0
        %1843 = vst [vmem:[%s322] sm:$0xff] %v1842
        %s1844 = sand.u32 %s132, 1
        %s1845 = scalar_lea.sflag [#allocation4], %s1844
        %s1846 = sand.u32 %s132, 1
        %s1847 = smul.addr %s1846, 8
        %s1848 = scalar_lea.vmem [#allocation10], %s1847
        %s1849 = sand.u32 %s158, 1
        %s1850 = scalar_lea.sflag [#allocation12], %s1849
        %s1851 = sand.u32 %s158, 1
        %s1852 = smul.addr %s1851, 8
        %s1853 = scalar_lea.vmem [#allocation11], %s1852
        // Predicated region
        $region53: #{tpu_custom_call.1} parent=35 // pred_check
          %p1854 = pneg %p142
        $region54: #{tpu_custom_call.1} parent=35 // pred_check_branch
          %1856 = sbr.rel (%p1854) target = $region56
        $region55: #{tpu_custom_call.1} parent=35 // pred_region
          %s1858 = ssub.s32 128, 128
          %1859 = vsyncadd %s1845, %s1858
          %s1860 = smul.addr %s30, 128
          %s1861 = scalar_lea.hbm %s4, %s1860
          %s1863 = sshll.u32 %s1848, 4
          %s1864 = int_to_ptr.vmem [resolvable:$true] %s1863
          %1866 = dma.vmem_to_hbm [thread:$0]  %s1864, 128, %s1861, %s1845
        $region56: #{tpu_custom_call.1} parent=35 // pred_fallthru
          _
        // Predicated region
        $region57: #{tpu_custom_call.1} parent=35 // pred_check
          %p1867 = pneg %p168
        $region58: #{tpu_custom_call.1} parent=35 // pred_check_branch
          %1869 = sbr.rel (%p1867) target = $region60
        $region59: #{tpu_custom_call.1} parent=35 // pred_region
          %s1871 = ssub.s32 128, 128
          %1872 = vsyncadd %s1850, %s1871
          %s1873 = smul.addr %s30, 128
          %s1874 = scalar_lea.hbm %s5, %s1873
          %s1876 = sshll.u32 %s1853, 4
          %s1877 = int_to_ptr.vmem [resolvable:$true] %s1876
          %1879 = dma.vmem_to_hbm [thread:$0]  %s1877, 128, %s1874, %s1850
        $region60: #{tpu_custom_call.1} parent=35 // pred_fallthru
          _
      $region36: #{tpu_custom_call.1} parent=5 // pred_fallthru
        _
      %p1880 = scmp.le.s32.totalorder 2, %s25
      // Predicated region
      $region61: #{tpu_custom_call.1} parent=5 // pred_check
        %p1881 = pneg %p1880
      $region62: #{tpu_custom_call.1} parent=5 // pred_check_branch
        %1883 = sbr.rel (%p1881) target = $region64
      $region63: #{tpu_custom_call.1} parent=5 // pred_region
        %s1884 = ssub.s32 %s25, 2
        // Predicated region
        $region65: #{tpu_custom_call.1} parent=63 // pred_check
          %p1885 = pneg %p148
        $region66: #{tpu_custom_call.1} parent=63 // pred_check_branch
          %1887 = sbr.rel (%p1885) target = $region68
        $region67: #{tpu_custom_call.1} parent=63 // pred_region
          %s1888 = sand.u32 %s133, 1
          %s1889 = scalar_lea.sflag [#allocation4], %s1888
          %s1890 = sand.u32 %s133, 1
          %s1891 = smul.addr %s1890, 8
          %s1892 = scalar_lea.vmem [#allocation10], %s1891
          %1893 = dma.done %s1889, 128
        $region68: #{tpu_custom_call.1} parent=63 // pred_fallthru
          _
        // Predicated region
        $region69: #{tpu_custom_call.1} parent=63 // pred_check
          %p1894 = pneg %p174
        $region70: #{tpu_custom_call.1} parent=63 // pred_check_branch
          %1896 = sbr.rel (%p1894) target = $region72
        $region71: #{tpu_custom_call.1} parent=63 // pred_region
          %s1897 = sand.u32 %s159, 1
          %s1898 = scalar_lea.sflag [#allocation12], %s1897
          %s1899 = sand.u32 %s159, 1
          %s1900 = smul.addr %s1899, 8
          %s1901 = scalar_lea.vmem [#allocation11], %s1900
          %1902 = dma.done %s1898, 128
        $region72: #{tpu_custom_call.1} parent=63 // pred_fallthru
          _
      $region64: #{tpu_custom_call.1} parent=5 // pred_fallthru
        _
    $region6: #{tpu_custom_call.1} parent=1 // loop_footer
      %s29 = sadd.s32 1, %s25
    $region7: #{tpu_custom_call.1} parent=1 // loop_footer_branch
      %24 = sbr.rel target = $region3
    $region8: #{tpu_custom_call.1} parent=1 // loop_exit
      _
    %1903 = vsyncpa [#allocation3], 1
    %s1904 = scalar_lea.sflag [#allocation3], 1
    %1905 = vsyncpa %s1904, 1
    %1906 = vsyncpa [#allocation6], 1
    %s1907 = scalar_lea.sflag [#allocation6], 1
    %1908 = vsyncpa %s1907, 1
    %1909 = vsyncpa [#allocation9], 1
    %1910 = vsyncpa [#allocation4], 1
    %s1911 = scalar_lea.sflag [#allocation4], 1
    %1912 = vsyncpa %s1911, 1
    %1913 = vsyncpa [#allocation12], 1
    %s1914 = scalar_lea.sflag [#allocation12], 1
    %1915 = vsyncpa %s1914, 1

</llo_original>
